<compile_context>
chip_gen: v6e
topology: v6e:2x2x1
jax: 0.10.0
libtpu: 0.0.40
codegen_flags: <defaults>
</compile_context>

<pallas_src>
import jax
import jax.numpy as jnp
from jax import lax
from jax.experimental import pallas as pl
from jax.experimental.pallas import tpu as pltpu


_SUBLANE = 8
_UNROLL_T_MAX = 32   # statically unroll the time loop only for small static T


# ----------------------------------------------------------------------------
# Fused kernel: all LSTM layers + MLP head in one invocation (no grid).
# ----------------------------------------------------------------------------
def _make_fused_lstm_head_kernel(num_layers, T, Bp, H):
    unroll = T <= _UNROLL_T_MAX

    def cell(gates, c_prev):
        # Gate columns were reordered at weight-prep time to (i, f, o | g), so one
        # sigmoid pass covers (Bp, 3H) and one tanh pass covers (Bp, H) -- half the
        # EUP work of applying both nonlinearities over the full (Bp, 4H).
        sig = jax.nn.sigmoid(gates[:, : 3 * H])
        g_g = jnp.tanh(gates[:, 3 * H:])
        i_g = sig[:, 0 * H:1 * H]
        f_g = sig[:, 1 * H:2 * H]
        o_g = sig[:, 2 * H:3 * H]
        c_new = f_g * c_prev + i_g * g_g
        h_new = o_g * jnp.tanh(c_new)
        return h_new, c_new

    def kernel(*refs):
        idx = 0
        x_ref = refs[idx]; idx += 1                       # (T*Bp, I) bf16, time-major
        layer_refs = []
        for _ in range(num_layers):                       # per layer: W_ih^T, W_hh^T, bias
            layer_refs.append((refs[idx], refs[idx + 1], refs[idx + 2]))
            idx += 3
        fc1w_ref, fc1b_ref, fc2w_ref, fc2b_ref = refs[idx:idx + 4]; idx += 4
        out_ref = refs[idx]; idx += 1
        gproj_sc = refs[idx]; idx += 1                    # (T*Bp, 4H) f32 scratch
        hseq_sc = refs[idx] if num_layers > 1 else None   # (T*Bp, H) bf16 scratch

        h = jnp.zeros((Bp, H), jnp.float32)
        c = jnp.zeros((Bp, H), jnp.float32)

        for layer, (wih_ref, whh_ref, b_ref) in enumerate(layer_refs):
            write_seq = layer < num_layers - 1
            # Hoisted input projection for ALL timesteps of this layer: one
            # lane-dense bf16 MXU GEMM with f32 accumulation.  Layer 0 reads the
            # raw (narrow) input; deeper layers read the previous layer's hidden
            # sequence straight from VMEM (never round-trips HBM).
            inp = x_ref[...] if layer == 0 else hseq_sc[...]
            gproj_sc[...] = (
                jnp.dot(inp, wih_ref[...], preferred_element_type=jnp.float32)
                + b_ref[...])
            whh = whh_ref[...]                            # (H, 4H) bf16

            h = jnp.zeros((Bp, H), jnp.float32)
            c = jnp.zeros((Bp, H), jnp.float32)

            def step(row, h, c, whh=whh, write_seq=write_seq):
                gates = gproj_sc[pl.ds(row, Bp), :] + jnp.dot(
                    h.astype(jnp.bfloat16), whh,
                    preferred_element_type=jnp.float32)
                h, c = cell(gates, c)
                if write_seq:                             # last layer: only h_T needed
                    hseq_sc[pl.ds(row, Bp), :] = h.astype(jnp.bfloat16)
                return h, c

            if unroll:
                for t in range(T):                        # static, sublane-aligned rows
                    h, c = step(t * Bp, h, c)
            else:
                def body(t, carry, step=step):
                    hh, cc = carry
                    row = pl.multiple_of(t * Bp, _SUBLANE)
                    return step(row, hh, cc)
                h, c = lax.fori_loop(0, T, body, (h, c))

        # ---- head: relu -> fc1 -> relu -> fc2 on the final hidden state only ----
        hr = jnp.maximum(h, 0.0).astype(jnp.bfloat16)
        z1 = jnp.dot(hr, fc1w_ref[...],
                     preferred_element_type=jnp.float32) + fc1b_ref[...]
        z1 = jnp.maximum(z1, 0.0).astype(jnp.bfloat16)
        out_ref[...] = jnp.dot(z1, fc2w_ref[...],
                               preferred_element_type=jnp.float32) + fc2b_ref[...]

    return kernel


# ----------------------------------------------------------------------------
# Weight prep helpers.
# ----------------------------------------------------------------------------
def _reorder_gates(w, H, axis):
    """PyTorch gate order (i, f, g, o) -> kernel order (i, f, o, g) along `axis`."""
    i_f = lax.slice_in_dim(w, 0, 2 * H, axis=axis)
    g = lax.slice_in_dim(w, 2 * H, 3 * H, axis=axis)
    o = lax.slice_in_dim(w, 3 * H, 4 * H, axis=axis)
    return jnp.concatenate([i_f, o, g], axis=axis)


def init_params(key, input_size, hidden_size, num_layers, fully_layer_size,
                output_size):
    """PyTorch-style uniform(-1/sqrt(H), 1/sqrt(H)) init, weights pre-transposed."""
    params = {"lstm": []}
    k = 1.0 / jnp.sqrt(hidden_size)
    keys = jax.random.split(key, num_layers * 4 + 4)
    ki = 0
    for layer in range(num_layers):
        in_sz = input_size if layer == 0 else hidden_size
        w_ih = jax.random.uniform(keys[ki], (4 * hidden_size, in_sz), jnp.float32, -k, k); ki += 1
        w_hh = jax.random.uniform(keys[ki], (4 * hidden_size, hidden_size), jnp.float32, -k, k); ki += 1
        b_ih = jax.random.uniform(keys[ki], (4 * hidden_size,), jnp.float32, -k, k); ki += 1
        b_hh = jax.random.uniform(keys[ki], (4 * hidden_size,), jnp.float32, -k, k); ki += 1
        params["lstm"].append(
            {"w_ih_t": w_ih.T, "w_hh_t": w_hh.T, "bias": b_ih + b_hh})
    k1 = 1.0 / jnp.sqrt(hidden_size)
    params["fc1_w_t"] = jax.random.uniform(
        keys[ki], (fully_layer_size, hidden_size), jnp.float32, -k1, k1).T; ki += 1
    params["fc1_b"] = jax.random.uniform(
        keys[ki], (fully_layer_size,), jnp.float32, -k1, k1); ki += 1
    k2 = 1.0 / jnp.sqrt(fully_layer_size)
    params["fc2_w_t"] = jax.random.uniform(
        keys[ki], (output_size, fully_layer_size), jnp.float32, -k2, k2).T; ki += 1
    params["fc2_b"] = jax.random.uniform(
        keys[ki], (output_size,), jnp.float32, -k2, k2); ki += 1
    return params


# ----------------------------------------------------------------------------
# Full model wrapper.
# ----------------------------------------------------------------------------
@jax.jit
def lstm_model_forward(x_bti, params):
    """x_bti: (B, T, input_size) f32 -> (B, output_size) f32."""
    x = x_bti.astype(jnp.float32)
    B, T, I = x.shape
    lstm_ps = params["lstm"]
    L = len(lstm_ps)
    H = lstm_ps[0]["w_hh_t"].shape[0]
    G = 4 * H
    F = params["fc1_w_t"].shape[1]
    O = params["fc2_w_t"].shape[1]

    # Pad the batch to a sublane multiple so every per-timestep slice inside the
    # kernel lands on an (8, 128) tile boundary.  Padded rows are discarded at the
    # end and never influence the real rows.
    Bp = max(_SUBLANE, ((B + _SUBLANE - 1) // _SUBLANE) * _SUBLANE)
    if Bp != B:
        x = jnp.pad(x, ((0, Bp - B), (0, 0), (0, 0)))
    # Time-major, flattened, bf16 matmul operand (f32 accumulation in-kernel).
    x_tm = jnp.transpose(x, (1, 0, 2)).reshape(T * Bp, I).astype(jnp.bfloat16)

    args = [x_tm]
    for lp in lstm_ps:
        args.append(_reorder_gates(lp["w_ih_t"], H, axis=1).astype(jnp.bfloat16))
        args.append(_reorder_gates(lp["w_hh_t"], H, axis=1).astype(jnp.bfloat16))
        args.append(_reorder_gates(lp["bias"], H, axis=0).reshape(1, G))  # f32
    args += [params["fc1_w_t"].astype(jnp.bfloat16),
             params["fc1_b"].reshape(1, F),
             params["fc2_w_t"].astype(jnp.bfloat16),
             params["fc2_b"].reshape(1, O)]

    scratch = [pltpu.VMEM((T * Bp, G), jnp.float32)]      # per-layer gate projections
    if L > 1:
        scratch.append(pltpu.VMEM((T * Bp, H), jnp.bfloat16))  # inter-layer h sequence

    # Explicit VMEM budget from the actual resident buffers (plus headroom).
    arg_bytes = sum(int(a.size) * a.dtype.itemsize for a in args)
    scratch_bytes = T * Bp * G * 4 + (T * Bp * H * 2 if L > 1 else 0)
    out_bytes = Bp * O * 4
    vmem_limit = min(int(1.5 * (arg_bytes + scratch_bytes + out_bytes)) + (4 << 20),
                     100 << 20)

    kernel = _make_fused_lstm_head_kernel(L, T, Bp, H)
    out = pl.pallas_call(
        kernel,
        out_shape=jax.ShapeDtypeStruct((Bp, O), jnp.float32),
        scratch_shapes=scratch,
        compiler_params=pltpu.CompilerParams(vmem_limit_bytes=vmem_limit),
    )(*args)
    return out[:B]


# ----------------------------------------------------------------------------
# Pure-JAX f32 reference (mirrors the PyTorch forward) for a correctness check.
# ----------------------------------------------------------------------------
def reference_forward(x, params):
    B, T, _ = x.shape
    h_seq = x.astype(jnp.float32)
    for lp in params["lstm"]:
        H = lp["w_hh_t"].shape[0]
        h = jnp.zeros((B, H), jnp.float32)
        c = jnp.zeros((B, H), jnp.float32)
        outs = []
        for t in range(T):
            g = h_seq[:, t, :] @ lp["w_ih_t"] + h @ lp["w_hh_t"] + lp["bias"]
            i = jax.nn.sigmoid(g[:, 0 * H:1 * H])
            f = jax.nn.sigmoid(g[:, 1 * H:2 * H])
            gg = jnp.tanh(g[:, 2 * H:3 * H])
            o = jax.nn.sigmoid(g[:, 3 * H:4 * H])
            c = f * c + i * gg
            h = o * jnp.tanh(c)
            outs.append(h)
        h_seq = jnp.stack(outs, axis=1)
    out = jnp.maximum(h_seq[:, -1], 0.0)
    out = jnp.maximum(out @ params["fc1_w_t"] + params["fc1_b"], 0.0)
    return out @ params["fc2_w_t"] + params["fc2_b"]


if __name__ == "__main__":
    # Small, module-consistent shapes.
    batch_size = 2
    seq_len = 8
    input_size = 16
    hidden_size = 32
    num_layers = 2
    fully_layer_size = 64
    output_size = 4

    key = jax.random.PRNGKey(0)
    k_params, k_x = jax.random.split(key)
    params = init_params(k_params, input_size, hidden_size, num_layers,
                         fully_layer_size, output_size)
    x = jax.random.normal(k_x, (batch_size, seq_len, input_size), jnp.float32)

    out = lstm_model_forward(x, params)
    jax.block_until_ready(out)
    assert out.shape == (batch_size, output_size)

    ref = reference_forward(x, params)
    # Tolerances loosened vs. the pure-f32 version: matmul operands are bf16
    # (accumulation and h/c stay f32).
    assert jnp.allclose(out, ref, rtol=5e-2, atol=2e-2), (out, ref)

    print("KERNEL_OK")
</pallas_src>

<mosaic_0001>
module attributes {stable_mosaic.version = 11 : i64} {
  func.func @kernel(%arg0: memref<64x16xbf16, #tpu.memory_space<vmem>>, %arg1: memref<16x128xbf16, #tpu.memory_space<vmem>>, %arg2: memref<32x128xbf16, #tpu.memory_space<vmem>>, %arg3: memref<1x128xf32, #tpu.memory_space<vmem>>, %arg4: memref<32x128xbf16, #tpu.memory_space<vmem>>, %arg5: memref<32x128xbf16, #tpu.memory_space<vmem>>, %arg6: memref<1x128xf32, #tpu.memory_space<vmem>>, %arg7: memref<32x64xbf16, #tpu.memory_space<vmem>>, %arg8: memref<1x64xf32, #tpu.memory_space<vmem>>, %arg9: memref<64x4xbf16, #tpu.memory_space<vmem>>, %arg10: memref<1x4xf32, #tpu.memory_space<vmem>>, %arg11: memref<8x4xf32, #tpu.memory_space<vmem>>, %arg12: memref<64x128xf32, #tpu.memory_space<vmem>>, %arg13: memref<64x32xbf16, #tpu.memory_space<vmem>>) attributes {dimension_semantics = [], scalar_prefetch = 0 : i64, scratch_operands = 2 : i64, tpu.core_type = #tpu.core_type<tc>} {
    %c0 = arith.constant 0 : index
    %c0_0 = arith.constant 0 : index
    %0 = vector.load %arg0[%c0, %c0_0] : memref<64x16xbf16, #tpu.memory_space<vmem>>, vector<64x16xbf16>
    %c0_1 = arith.constant 0 : index
    %c0_2 = arith.constant 0 : index
    %1 = vector.load %arg1[%c0_1, %c0_2] : memref<16x128xbf16, #tpu.memory_space<vmem>>, vector<16x128xbf16>
    %cst = arith.constant dense<0.000000e+00> : vector<64x128xf32>
    %2 = tpu.matmul %0, %1, %cst {dimension_numbers = #tpu.dot_dimension_numbers<[1], [0], [0], [1], [0, 0, 1, 1], [], []>} : vector<64x16xbf16>, vector<16x128xbf16>, vector<64x128xf32> -> vector<64x128xf32>
    %c0_3 = arith.constant 0 : index
    %c0_4 = arith.constant 0 : index
    %3 = vector.load %arg3[%c0_3, %c0_4] : memref<1x128xf32, #tpu.memory_space<vmem>>, vector<1x128xf32>
    %4 = vector.broadcast %3 : vector<1x128xf32> to vector<64x128xf32>
    %5 = arith.addf %2, %4 : vector<64x128xf32>
    %c0_5 = arith.constant 0 : index
    %c0_6 = arith.constant 0 : index
    %6 = vector.load %arg12[%c0_5, %c0_6] : memref<64x128xf32, #tpu.memory_space<vmem>>, vector<64x128xf32>
    tpu.vector_store %arg12[%c0_5, %c0_6], %5 {strides = array<i32>} : memref<64x128xf32, #tpu.memory_space<vmem>>, vector<64x128xf32>,
    %c0_7 = arith.constant 0 : index
    %c0_8 = arith.constant 0 : index
    %7 = vector.load %arg2[%c0_7, %c0_8] : memref<32x128xbf16, #tpu.memory_space<vmem>>, vector<32x128xbf16>
    %cst_9 = arith.constant 0.000000e+00 : f32
    %8 = vector.broadcast %cst_9 : f32 to vector<8x32xf32>
    %cst_10 = arith.constant 0.000000e+00 : f32
    %9 = vector.broadcast %cst_10 : f32 to vector<8x32xf32>
    %c0_11 = arith.constant 0 : index
    %c0_12 = arith.constant 0 : index
    %10 = vector.load %arg12[%c0_11, %c0_12] : memref<64x128xf32, #tpu.memory_space<vmem>>, vector<8x128xf32>
    %11 = arith.truncf %8 : vector<8x32xf32> to vector<8x32xbf16>
    %cst_13 = arith.constant dense<0.000000e+00> : vector<8x128xf32>
    %12 = tpu.matmul %11, %7, %cst_13 {dimension_numbers = #tpu.dot_dimension_numbers<[1], [0], [0], [1], [0, 0, 1, 1], [], []>} : vector<8x32xbf16>, vector<32x128xbf16>, vector<8x128xf32> -> vector<8x128xf32>
    %13 = arith.addf %10, %12 : vector<8x128xf32>
    %14 = vector.extract_strided_slice %13 {offsets = [0, 0], sizes = [8, 96], strides = [1, 1]} : vector<8x128xf32> to vector<8x96xf32>
    %15 = arith.negf %14 : vector<8x96xf32>
    %16 = math.exp %15 : vector<8x96xf32>
    %cst_14 = arith.constant 1.000000e+00 : f32
    %17 = vector.broadcast %cst_14 : f32 to vector<8x96xf32>
    %18 = arith.addf %17, %16 : vector<8x96xf32>
    %19 = arith.divf %17, %18 : vector<8x96xf32>
    %20 = vector.extract_strided_slice %13 {offsets = [0, 96], sizes = [8, 32], strides = [1, 1]} : vector<8x128xf32> to vector<8x32xf32>
    %21 = math.tanh %20 : vector<8x32xf32>
    %22 = vector.extract_strided_slice %19 {offsets = [0, 0], sizes = [8, 32], strides = [1, 1]} : vector<8x96xf32> to vector<8x32xf32>
    %23 = vector.extract_strided_slice %19 {offsets = [0, 32], sizes = [8, 32], strides = [1, 1]} : vector<8x96xf32> to vector<8x32xf32>
    %24 = vector.extract_strided_slice %19 {offsets = [0, 64], sizes = [8, 32], strides = [1, 1]} : vector<8x96xf32> to vector<8x32xf32>
    %25 = arith.mulf %23, %9 : vector<8x32xf32>
    %26 = arith.mulf %22, %21 : vector<8x32xf32>
    %27 = arith.addf %25, %26 : vector<8x32xf32>
    %28 = math.tanh %27 : vector<8x32xf32>
    %29 = arith.mulf %24, %28 : vector<8x32xf32>
    %30 = arith.truncf %29 : vector<8x32xf32> to vector<8x32xbf16>
    %c0_15 = arith.constant 0 : index
    %c0_16 = arith.constant 0 : index
    %31 = vector.load %arg13[%c0_15, %c0_16] : memref<64x32xbf16, #tpu.memory_space<vmem>>, vector<8x32xbf16>
    tpu.vector_store %arg13[%c0_15, %c0_16], %30 {strides = array<i32>} : memref<64x32xbf16, #tpu.memory_space<vmem>>, vector<8x32xbf16>,
    %c8 = arith.constant 8 : index
    %c0_17 = arith.constant 0 : index
    %32 = vector.load %arg12[%c8, %c0_17] : memref<64x128xf32, #tpu.memory_space<vmem>>, vector<8x128xf32>
    %33 = arith.truncf %29 : vector<8x32xf32> to vector<8x32xbf16>
    %cst_18 = arith.constant dense<0.000000e+00> : vector<8x128xf32>
    %34 = tpu.matmul %33, %7, %cst_18 {dimension_numbers = #tpu.dot_dimension_numbers<[1], [0], [0], [1], [0, 0, 1, 1], [], []>} : vector<8x32xbf16>, vector<32x128xbf16>, vector<8x128xf32> -> vector<8x128xf32>
    %35 = arith.addf %32, %34 : vector<8x128xf32>
    %36 = vector.extract_strided_slice %35 {offsets = [0, 0], sizes = [8, 96], strides = [1, 1]} : vector<8x128xf32> to vector<8x96xf32>
    %37 = arith.negf %36 : vector<8x96xf32>
    %38 = math.exp %37 : vector<8x96xf32>
    %cst_19 = arith.constant 1.000000e+00 : f32
    %39 = vector.broadcast %cst_19 : f32 to vector<8x96xf32>
    %40 = arith.addf %39, %38 : vector<8x96xf32>
    %41 = arith.divf %39, %40 : vector<8x96xf32>
    %42 = vector.extract_strided_slice %35 {offsets = [0, 96], sizes = [8, 32], strides = [1, 1]} : vector<8x128xf32> to vector<8x32xf32>
    %43 = math.tanh %42 : vector<8x32xf32>
    %44 = vector.extract_strided_slice %41 {offsets = [0, 0], sizes = [8, 32], strides = [1, 1]} : vector<8x96xf32> to vector<8x32xf32>
    %45 = vector.extract_strided_slice %41 {offsets = [0, 32], sizes = [8, 32], strides = [1, 1]} : vector<8x96xf32> to vector<8x32xf32>
    %46 = vector.extract_strided_slice %41 {offsets = [0, 64], sizes = [8, 32], strides = [1, 1]} : vector<8x96xf32> to vector<8x32xf32>
    %47 = arith.mulf %45, %27 : vector<8x32xf32>
    %48 = arith.mulf %44, %43 : vector<8x32xf32>
    %49 = arith.addf %47, %48 : vector<8x32xf32>
    %50 = math.tanh %49 : vector<8x32xf32>
    %51 = arith.mulf %46, %50 : vector<8x32xf32>
    %52 = arith.truncf %51 : vector<8x32xf32> to vector<8x32xbf16>
    %c8_20 = arith.constant 8 : index
    %c0_21 = arith.constant 0 : index
    %53 = vector.load %arg13[%c8_20, %c0_21] : memref<64x32xbf16, #tpu.memory_space<vmem>>, vector<8x32xbf16>
    tpu.vector_store %arg13[%c8_20, %c0_21], %52 {strides = array<i32>} : memref<64x32xbf16, #tpu.memory_space<vmem>>, vector<8x32xbf16>,
    %c16 = arith.constant 16 : index
    %c0_22 = arith.constant 0 : index
    %54 = vector.load %arg12[%c16, %c0_22] : memref<64x128xf32, #tpu.memory_space<vmem>>, vector<8x128xf32>
    %55 = arith.truncf %51 : vector<8x32xf32> to vector<8x32xbf16>
    %cst_23 = arith.constant dense<0.000000e+00> : vector<8x128xf32>
    %56 = tpu.matmul %55, %7, %cst_23 {dimension_numbers = #tpu.dot_dimension_numbers<[1], [0], [0], [1], [0, 0, 1, 1], [], []>} : vector<8x32xbf16>, vector<32x128xbf16>, vector<8x128xf32> -> vector<8x128xf32>
    %57 = arith.addf %54, %56 : vector<8x128xf32>
    %58 = vector.extract_strided_slice %57 {offsets = [0, 0], sizes = [8, 96], strides = [1, 1]} : vector<8x128xf32> to vector<8x96xf32>
    %59 = arith.negf %58 : vector<8x96xf32>
    %60 = math.exp %59 : vector<8x96xf32>
    %cst_24 = arith.constant 1.000000e+00 : f32
    %61 = vector.broadcast %cst_24 : f32 to vector<8x96xf32>
    %62 = arith.addf %61, %60 : vector<8x96xf32>
    %63 = arith.divf %61, %62 : vector<8x96xf32>
    %64 = vector.extract_strided_slice %57 {offsets = [0, 96], sizes = [8, 32], strides = [1, 1]} : vector<8x128xf32> to vector<8x32xf32>
    %65 = math.tanh %64 : vector<8x32xf32>
    %66 = vector.extract_strided_slice %63 {offsets = [0, 0], sizes = [8, 32], strides = [1, 1]} : vector<8x96xf32> to vector<8x32xf32>
    %67 = vector.extract_strided_slice %63 {offsets = [0, 32], sizes = [8, 32], strides = [1, 1]} : vector<8x96xf32> to vector<8x32xf32>
    %68 = vector.extract_strided_slice %63 {offsets = [0, 64], sizes = [8, 32], strides = [1, 1]} : vector<8x96xf32> to vector<8x32xf32>
    %69 = arith.mulf %67, %49 : vector<8x32xf32>
    %70 = arith.mulf %66, %65 : vector<8x32xf32>
    %71 = arith.addf %69, %70 : vector<8x32xf32>
    %72 = math.tanh %71 : vector<8x32xf32>
    %73 = arith.mulf %68, %72 : vector<8x32xf32>
    %74 = arith.truncf %73 : vector<8x32xf32> to vector<8x32xbf16>
    %c16_25 = arith.constant 16 : index
    %c0_26 = arith.constant 0 : index
    %75 = vector.load %arg13[%c16_25, %c0_26] : memref<64x32xbf16, #tpu.memory_space<vmem>>, vector<8x32xbf16>
    tpu.vector_store %arg13[%c16_25, %c0_26], %74 {strides = array<i32>} : memref<64x32xbf16, #tpu.memory_space<vmem>>, vector<8x32xbf16>,
    %c24 = arith.constant 24 : index
    %c0_27 = arith.constant 0 : index
    %76 = vector.load %arg12[%c24, %c0_27] : memref<64x128xf32, #tpu.memory_space<vmem>>, vector<8x128xf32>
    %77 = arith.truncf %73 : vector<8x32xf32> to vector<8x32xbf16>
    %cst_28 = arith.constant dense<0.000000e+00> : vector<8x128xf32>
    %78 = tpu.matmul %77, %7, %cst_28 {dimension_numbers = #tpu.dot_dimension_numbers<[1], [0], [0], [1], [0, 0, 1, 1], [], []>} : vector<8x32xbf16>, vector<32x128xbf16>, vector<8x128xf32> -> vector<8x128xf32>
    %79 = arith.addf %76, %78 : vector<8x128xf32>
    %80 = vector.extract_strided_slice %79 {offsets = [0, 0], sizes = [8, 96], strides = [1, 1]} : vector<8x128xf32> to vector<8x96xf32>
    %81 = arith.negf %80 : vector<8x96xf32>
    %82 = math.exp %81 : vector<8x96xf32>
    %cst_29 = arith.constant 1.000000e+00 : f32
    %83 = vector.broadcast %cst_29 : f32 to vector<8x96xf32>
    %84 = arith.addf %83, %82 : vector<8x96xf32>
    %85 = arith.divf %83, %84 : vector<8x96xf32>
    %86 = vector.extract_strided_slice %79 {offsets = [0, 96], sizes = [8, 32], strides = [1, 1]} : vector<8x128xf32> to vector<8x32xf32>
    %87 = math.tanh %86 : vector<8x32xf32>
    %88 = vector.extract_strided_slice %85 {offsets = [0, 0], sizes = [8, 32], strides = [1, 1]} : vector<8x96xf32> to vector<8x32xf32>
    %89 = vector.extract_strided_slice %85 {offsets = [0, 32], sizes = [8, 32], strides = [1, 1]} : vector<8x96xf32> to vector<8x32xf32>
    %90 = vector.extract_strided_slice %85 {offsets = [0, 64], sizes = [8, 32], strides = [1, 1]} : vector<8x96xf32> to vector<8x32xf32>
    %91 = arith.mulf %89, %71 : vector<8x32xf32>
    %92 = arith.mulf %88, %87 : vector<8x32xf32>
    %93 = arith.addf %91, %92 : vector<8x32xf32>
    %94 = math.tanh %93 : vector<8x32xf32>
    %95 = arith.mulf %90, %94 : vector<8x32xf32>
    %96 = arith.truncf %95 : vector<8x32xf32> to vector<8x32xbf16>
    %c24_30 = arith.constant 24 : index
    %c0_31 = arith.constant 0 : index
    %97 = vector.load %arg13[%c24_30, %c0_31] : memref<64x32xbf16, #tpu.memory_space<vmem>>, vector<8x32xbf16>
    tpu.vector_store %arg13[%c24_30, %c0_31], %96 {strides = array<i32>} : memref<64x32xbf16, #tpu.memory_space<vmem>>, vector<8x32xbf16>,
    %c32 = arith.constant 32 : index
    %c0_32 = arith.constant 0 : index
    %98 = vector.load %arg12[%c32, %c0_32] : memref<64x128xf32, #tpu.memory_space<vmem>>, vector<8x128xf32>
    %99 = arith.truncf %95 : vector<8x32xf32> to vector<8x32xbf16>
    %cst_33 = arith.constant dense<0.000000e+00> : vector<8x128xf32>
    %100 = tpu.matmul %99, %7, %cst_33 {dimension_numbers = #tpu.dot_dimension_numbers<[1], [0], [0], [1], [0, 0, 1, 1], [], []>} : vector<8x32xbf16>, vector<32x128xbf16>, vector<8x128xf32> -> vector<8x128xf32>
    %101 = arith.addf %98, %100 : vector<8x128xf32>
    %102 = vector.extract_strided_slice %101 {offsets = [0, 0], sizes = [8, 96], strides = [1, 1]} : vector<8x128xf32> to vector<8x96xf32>
    %103 = arith.negf %102 : vector<8x96xf32>
    %104 = math.exp %103 : vector<8x96xf32>
    %cst_34 = arith.constant 1.000000e+00 : f32
    %105 = vector.broadcast %cst_34 : f32 to vector<8x96xf32>
    %106 = arith.addf %105, %104 : vector<8x96xf32>
    %107 = arith.divf %105, %106 : vector<8x96xf32>
    %108 = vector.extract_strided_slice %101 {offsets = [0, 96], sizes = [8, 32], strides = [1, 1]} : vector<8x128xf32> to vector<8x32xf32>
    %109 = math.tanh %108 : vector<8x32xf32>
    %110 = vector.extract_strided_slice %107 {offsets = [0, 0], sizes = [8, 32], strides = [1, 1]} : vector<8x96xf32> to vector<8x32xf32>
    %111 = vector.extract_strided_slice %107 {offsets = [0, 32], sizes = [8, 32], strides = [1, 1]} : vector<8x96xf32> to vector<8x32xf32>
    %112 = vector.extract_strided_slice %107 {offsets = [0, 64], sizes = [8, 32], strides = [1, 1]} : vector<8x96xf32> to vector<8x32xf32>
    %113 = arith.mulf %111, %93 : vector<8x32xf32>
    %114 = arith.mulf %110, %109 : vector<8x32xf32>
    %115 = arith.addf %113, %114 : vector<8x32xf32>
    %116 = math.tanh %115 : vector<8x32xf32>
    %117 = arith.mulf %112, %116 : vector<8x32xf32>
    %118 = arith.truncf %117 : vector<8x32xf32> to vector<8x32xbf16>
    %c32_35 = arith.constant 32 : index
    %c0_36 = arith.constant 0 : index
    %119 = vector.load %arg13[%c32_35, %c0_36] : memref<64x32xbf16, #tpu.memory_space<vmem>>, vector<8x32xbf16>
    tpu.vector_store %arg13[%c32_35, %c0_36], %118 {strides = array<i32>} : memref<64x32xbf16, #tpu.memory_space<vmem>>, vector<8x32xbf16>,
    %c40 = arith.constant 40 : index
    %c0_37 = arith.constant 0 : index
    %120 = vector.load %arg12[%c40, %c0_37] : memref<64x128xf32, #tpu.memory_space<vmem>>, vector<8x128xf32>
    %121 = arith.truncf %117 : vector<8x32xf32> to vector<8x32xbf16>
    %cst_38 = arith.constant dense<0.000000e+00> : vector<8x128xf32>
    %122 = tpu.matmul %121, %7, %cst_38 {dimension_numbers = #tpu.dot_dimension_numbers<[1], [0], [0], [1], [0, 0, 1, 1], [], []>} : vector<8x32xbf16>, vector<32x128xbf16>, vector<8x128xf32> -> vector<8x128xf32>
    %123 = arith.addf %120, %122 : vector<8x128xf32>
    %124 = vector.extract_strided_slice %123 {offsets = [0, 0], sizes = [8, 96], strides = [1, 1]} : vector<8x128xf32> to vector<8x96xf32>
    %125 = arith.negf %124 : vector<8x96xf32>
    %126 = math.exp %125 : vector<8x96xf32>
    %cst_39 = arith.constant 1.000000e+00 : f32
    %127 = vector.broadcast %cst_39 : f32 to vector<8x96xf32>
    %128 = arith.addf %127, %126 : vector<8x96xf32>
    %129 = arith.divf %127, %128 : vector<8x96xf32>
    %130 = vector.extract_strided_slice %123 {offsets = [0, 96], sizes = [8, 32], strides = [1, 1]} : vector<8x128xf32> to vector<8x32xf32>
    %131 = math.tanh %130 : vector<8x32xf32>
    %132 = vector.extract_strided_slice %129 {offsets = [0, 0], sizes = [8, 32], strides = [1, 1]} : vector<8x96xf32> to vector<8x32xf32>
    %133 = vector.extract_strided_slice %129 {offsets = [0, 32], sizes = [8, 32], strides = [1, 1]} : vector<8x96xf32> to vector<8x32xf32>
    %134 = vector.extract_strided_slice %129 {offsets = [0, 64], sizes = [8, 32], strides = [1, 1]} : vector<8x96xf32> to vector<8x32xf32>
    %135 = arith.mulf %133, %115 : vector<8x32xf32>
    %136 = arith.mulf %132, %131 : vector<8x32xf32>
    %137 = arith.addf %135, %136 : vector<8x32xf32>
    %138 = math.tanh %137 : vector<8x32xf32>
    %139 = arith.mulf %134, %138 : vector<8x32xf32>
    %140 = arith.truncf %139 : vector<8x32xf32> to vector<8x32xbf16>
    %c40_40 = arith.constant 40 : index
    %c0_41 = arith.constant 0 : index
    %141 = vector.load %arg13[%c40_40, %c0_41] : memref<64x32xbf16, #tpu.memory_space<vmem>>, vector<8x32xbf16>
    tpu.vector_store %arg13[%c40_40, %c0_41], %140 {strides = array<i32>} : memref<64x32xbf16, #tpu.memory_space<vmem>>, vector<8x32xbf16>,
    %c48 = arith.constant 48 : index
    %c0_42 = arith.constant 0 : index
    %142 = vector.load %arg12[%c48, %c0_42] : memref<64x128xf32, #tpu.memory_space<vmem>>, vector<8x128xf32>
    %143 = arith.truncf %139 : vector<8x32xf32> to vector<8x32xbf16>
    %cst_43 = arith.constant dense<0.000000e+00> : vector<8x128xf32>
    %144 = tpu.matmul %143, %7, %cst_43 {dimension_numbers = #tpu.dot_dimension_numbers<[1], [0], [0], [1], [0, 0, 1, 1], [], []>} : vector<8x32xbf16>, vector<32x128xbf16>, vector<8x128xf32> -> vector<8x128xf32>
    %145 = arith.addf %142, %144 : vector<8x128xf32>
    %146 = vector.extract_strided_slice %145 {offsets = [0, 0], sizes = [8, 96], strides = [1, 1]} : vector<8x128xf32> to vector<8x96xf32>
    %147 = arith.negf %146 : vector<8x96xf32>
    %148 = math.exp %147 : vector<8x96xf32>
    %cst_44 = arith.constant 1.000000e+00 : f32
    %149 = vector.broadcast %cst_44 : f32 to vector<8x96xf32>
    %150 = arith.addf %149, %148 : vector<8x96xf32>
    %151 = arith.divf %149, %150 : vector<8x96xf32>
    %152 = vector.extract_strided_slice %145 {offsets = [0, 96], sizes = [8, 32], strides = [1, 1]} : vector<8x128xf32> to vector<8x32xf32>
    %153 = math.tanh %152 : vector<8x32xf32>
    %154 = vector.extract_strided_slice %151 {offsets = [0, 0], sizes = [8, 32], strides = [1, 1]} : vector<8x96xf32> to vector<8x32xf32>
    %155 = vector.extract_strided_slice %151 {offsets = [0, 32], sizes = [8, 32], strides = [1, 1]} : vector<8x96xf32> to vector<8x32xf32>
    %156 = vector.extract_strided_slice %151 {offsets = [0, 64], sizes = [8, 32], strides = [1, 1]} : vector<8x96xf32> to vector<8x32xf32>
    %157 = arith.mulf %155, %137 : vector<8x32xf32>
    %158 = arith.mulf %154, %153 : vector<8x32xf32>
    %159 = arith.addf %157, %158 : vector<8x32xf32>
    %160 = math.tanh %159 : vector<8x32xf32>
    %161 = arith.mulf %156, %160 : vector<8x32xf32>
    %162 = arith.truncf %161 : vector<8x32xf32> to vector<8x32xbf16>
    %c48_45 = arith.constant 48 : index
    %c0_46 = arith.constant 0 : index
    %163 = vector.load %arg13[%c48_45, %c0_46] : memref<64x32xbf16, #tpu.memory_space<vmem>>, vector<8x32xbf16>
    tpu.vector_store %arg13[%c48_45, %c0_46], %162 {strides = array<i32>} : memref<64x32xbf16, #tpu.memory_space<vmem>>, vector<8x32xbf16>,
    %c56 = arith.constant 56 : index
    %c0_47 = arith.constant 0 : index
    %164 = vector.load %arg12[%c56, %c0_47] : memref<64x128xf32, #tpu.memory_space<vmem>>, vector<8x128xf32>
    %165 = arith.truncf %161 : vector<8x32xf32> to vector<8x32xbf16>
    %cst_48 = arith.constant dense<0.000000e+00> : vector<8x128xf32>
    %166 = tpu.matmul %165, %7, %cst_48 {dimension_numbers = #tpu.dot_dimension_numbers<[1], [0], [0], [1], [0, 0, 1, 1], [], []>} : vector<8x32xbf16>, vector<32x128xbf16>, vector<8x128xf32> -> vector<8x128xf32>
    %167 = arith.addf %164, %166 : vector<8x128xf32>
    %168 = vector.extract_strided_slice %167 {offsets = [0, 0], sizes = [8, 96], strides = [1, 1]} : vector<8x128xf32> to vector<8x96xf32>
    %169 = arith.negf %168 : vector<8x96xf32>
    %170 = math.exp %169 : vector<8x96xf32>
    %cst_49 = arith.constant 1.000000e+00 : f32
    %171 = vector.broadcast %cst_49 : f32 to vector<8x96xf32>
    %172 = arith.addf %171, %170 : vector<8x96xf32>
    %173 = arith.divf %171, %172 : vector<8x96xf32>
    %174 = vector.extract_strided_slice %167 {offsets = [0, 96], sizes = [8, 32], strides = [1, 1]} : vector<8x128xf32> to vector<8x32xf32>
    %175 = math.tanh %174 : vector<8x32xf32>
    %176 = vector.extract_strided_slice %173 {offsets = [0, 0], sizes = [8, 32], strides = [1, 1]} : vector<8x96xf32> to vector<8x32xf32>
    %177 = vector.extract_strided_slice %173 {offsets = [0, 32], sizes = [8, 32], strides = [1, 1]} : vector<8x96xf32> to vector<8x32xf32>
    %178 = vector.extract_strided_slice %173 {offsets = [0, 64], sizes = [8, 32], strides = [1, 1]} : vector<8x96xf32> to vector<8x32xf32>
    %179 = arith.mulf %177, %159 : vector<8x32xf32>
    %180 = arith.mulf %176, %175 : vector<8x32xf32>
    %181 = arith.addf %179, %180 : vector<8x32xf32>
    %182 = math.tanh %181 : vector<8x32xf32>
    %183 = arith.mulf %178, %182 : vector<8x32xf32>
    %184 = arith.truncf %183 : vector<8x32xf32> to vector<8x32xbf16>
    %c56_50 = arith.constant 56 : index
    %c0_51 = arith.constant 0 : index
    %185 = vector.load %arg13[%c56_50, %c0_51] : memref<64x32xbf16, #tpu.memory_space<vmem>>, vector<8x32xbf16>
    tpu.vector_store %arg13[%c56_50, %c0_51], %184 {strides = array<i32>} : memref<64x32xbf16, #tpu.memory_space<vmem>>, vector<8x32xbf16>,
    %c0_52 = arith.constant 0 : index
    %c0_53 = arith.constant 0 : index
    %186 = vector.load %arg13[%c0_52, %c0_53] : memref<64x32xbf16, #tpu.memory_space<vmem>>, vector<64x32xbf16>
    %c0_54 = arith.constant 0 : index
    %c0_55 = arith.constant 0 : index
    %187 = vector.load %arg4[%c0_54, %c0_55] : memref<32x128xbf16, #tpu.memory_space<vmem>>, vector<32x128xbf16>
    %cst_56 = arith.constant dense<0.000000e+00> : vector<64x128xf32>
    %188 = tpu.matmul %186, %187, %cst_56 {dimension_numbers = #tpu.dot_dimension_numbers<[1], [0], [0], [1], [0, 0, 1, 1], [], []>} : vector<64x32xbf16>, vector<32x128xbf16>, vector<64x128xf32> -> vector<64x128xf32>
    %c0_57 = arith.constant 0 : index
    %c0_58 = arith.constant 0 : index
    %189 = vector.load %arg6[%c0_57, %c0_58] : memref<1x128xf32, #tpu.memory_space<vmem>>, vector<1x128xf32>
    %190 = vector.broadcast %189 : vector<1x128xf32> to vector<64x128xf32>
    %191 = arith.addf %188, %190 : vector<64x128xf32>
    %c0_59 = arith.constant 0 : index
    %c0_60 = arith.constant 0 : index
    %192 = vector.load %arg12[%c0_59, %c0_60] : memref<64x128xf32, #tpu.memory_space<vmem>>, vector<64x128xf32>
    tpu.vector_store %arg12[%c0_59, %c0_60], %191 {strides = array<i32>} : memref<64x128xf32, #tpu.memory_space<vmem>>, vector<64x128xf32>,
    %c0_61 = arith.constant 0 : index
    %c0_62 = arith.constant 0 : index
    %193 = vector.load %arg5[%c0_61, %c0_62] : memref<32x128xbf16, #tpu.memory_space<vmem>>, vector<32x128xbf16>
    %cst_63 = arith.constant 0.000000e+00 : f32
    %194 = vector.broadcast %cst_63 : f32 to vector<8x32xf32>
    %cst_64 = arith.constant 0.000000e+00 : f32
    %195 = vector.broadcast %cst_64 : f32 to vector<8x32xf32>
    %c0_65 = arith.constant 0 : index
    %c0_66 = arith.constant 0 : index
    %196 = vector.load %arg12[%c0_65, %c0_66] : memref<64x128xf32, #tpu.memory_space<vmem>>, vector<8x128xf32>
    %197 = arith.truncf %194 : vector<8x32xf32> to vector<8x32xbf16>
    %cst_67 = arith.constant dense<0.000000e+00> : vector<8x128xf32>
    %198 = tpu.matmul %197, %193, %cst_67 {dimension_numbers = #tpu.dot_dimension_numbers<[1], [0], [0], [1], [0, 0, 1, 1], [], []>} : vector<8x32xbf16>, vector<32x128xbf16>, vector<8x128xf32> -> vector<8x128xf32>
    %199 = arith.addf %196, %198 : vector<8x128xf32>
    %200 = vector.extract_strided_slice %199 {offsets = [0, 0], sizes = [8, 96], strides = [1, 1]} : vector<8x128xf32> to vector<8x96xf32>
    %201 = arith.negf %200 : vector<8x96xf32>
    %202 = math.exp %201 : vector<8x96xf32>
    %cst_68 = arith.constant 1.000000e+00 : f32
    %203 = vector.broadcast %cst_68 : f32 to vector<8x96xf32>
    %204 = arith.addf %203, %202 : vector<8x96xf32>
    %205 = arith.divf %203, %204 : vector<8x96xf32>
    %206 = vector.extract_strided_slice %199 {offsets = [0, 96], sizes = [8, 32], strides = [1, 1]} : vector<8x128xf32> to vector<8x32xf32>
    %207 = math.tanh %206 : vector<8x32xf32>
    %208 = vector.extract_strided_slice %205 {offsets = [0, 0], sizes = [8, 32], strides = [1, 1]} : vector<8x96xf32> to vector<8x32xf32>
    %209 = vector.extract_strided_slice %205 {offsets = [0, 32], sizes = [8, 32], strides = [1, 1]} : vector<8x96xf32> to vector<8x32xf32>
    %210 = vector.extract_strided_slice %205 {offsets = [0, 64], sizes = [8, 32], strides = [1, 1]} : vector<8x96xf32> to vector<8x32xf32>
    %211 = arith.mulf %209, %195 : vector<8x32xf32>
    %212 = arith.mulf %208, %207 : vector<8x32xf32>
    %213 = arith.addf %211, %212 : vector<8x32xf32>
    %214 = math.tanh %213 : vector<8x32xf32>
    %215 = arith.mulf %210, %214 : vector<8x32xf32>
    %c8_69 = arith.constant 8 : index
    %c0_70 = arith.constant 0 : index
    %216 = vector.load %arg12[%c8_69, %c0_70] : memref<64x128xf32, #tpu.memory_space<vmem>>, vector<8x128xf32>
    %217 = arith.truncf %215 : vector<8x32xf32> to vector<8x32xbf16>
    %cst_71 = arith.constant dense<0.000000e+00> : vector<8x128xf32>
    %218 = tpu.matmul %217, %193, %cst_71 {dimension_numbers = #tpu.dot_dimension_numbers<[1], [0], [0], [1], [0, 0, 1, 1], [], []>} : vector<8x32xbf16>, vector<32x128xbf16>, vector<8x128xf32> -> vector<8x128xf32>
    %219 = arith.addf %216, %218 : vector<8x128xf32>
    %220 = vector.extract_strided_slice %219 {offsets = [0, 0], sizes = [8, 96], strides = [1, 1]} : vector<8x128xf32> to vector<8x96xf32>
    %221 = arith.negf %220 : vector<8x96xf32>
    %222 = math.exp %221 : vector<8x96xf32>
    %cst_72 = arith.constant 1.000000e+00 : f32
    %223 = vector.broadcast %cst_72 : f32 to vector<8x96xf32>
    %224 = arith.addf %223, %222 : vector<8x96xf32>
    %225 = arith.divf %223, %224 : vector<8x96xf32>
    %226 = vector.extract_strided_slice %219 {offsets = [0, 96], sizes = [8, 32], strides = [1, 1]} : vector<8x128xf32> to vector<8x32xf32>
    %227 = math.tanh %226 : vector<8x32xf32>
    %228 = vector.extract_strided_slice %225 {offsets = [0, 0], sizes = [8, 32], strides = [1, 1]} : vector<8x96xf32> to vector<8x32xf32>
    %229 = vector.extract_strided_slice %225 {offsets = [0, 32], sizes = [8, 32], strides = [1, 1]} : vector<8x96xf32> to vector<8x32xf32>
    %230 = vector.extract_strided_slice %225 {offsets = [0, 64], sizes = [8, 32], strides = [1, 1]} : vector<8x96xf32> to vector<8x32xf32>
    %231 = arith.mulf %229, %213 : vector<8x32xf32>
    %232 = arith.mulf %228, %227 : vector<8x32xf32>
    %233 = arith.addf %231, %232 : vector<8x32xf32>
    %234 = math.tanh %233 : vector<8x32xf32>
    %235 = arith.mulf %230, %234 : vector<8x32xf32>
    %c16_73 = arith.constant 16 : index
    %c0_74 = arith.constant 0 : index
    %236 = vector.load %arg12[%c16_73, %c0_74] : memref<64x128xf32, #tpu.memory_space<vmem>>, vector<8x128xf32>
    %237 = arith.truncf %235 : vector<8x32xf32> to vector<8x32xbf16>
    %cst_75 = arith.constant dense<0.000000e+00> : vector<8x128xf32>
    %238 = tpu.matmul %237, %193, %cst_75 {dimension_numbers = #tpu.dot_dimension_numbers<[1], [0], [0], [1], [0, 0, 1, 1], [], []>} : vector<8x32xbf16>, vector<32x128xbf16>, vector<8x128xf32> -> vector<8x128xf32>
    %239 = arith.addf %236, %238 : vector<8x128xf32>
    %240 = vector.extract_strided_slice %239 {offsets = [0, 0], sizes = [8, 96], strides = [1, 1]} : vector<8x128xf32> to vector<8x96xf32>
    %241 = arith.negf %240 : vector<8x96xf32>
    %242 = math.exp %241 : vector<8x96xf32>
    %cst_76 = arith.constant 1.000000e+00 : f32
    %243 = vector.broadcast %cst_76 : f32 to vector<8x96xf32>
    %244 = arith.addf %243, %242 : vector<8x96xf32>
    %245 = arith.divf %243, %244 : vector<8x96xf32>
    %246 = vector.extract_strided_slice %239 {offsets = [0, 96], sizes = [8, 32], strides = [1, 1]} : vector<8x128xf32> to vector<8x32xf32>
    %247 = math.tanh %246 : vector<8x32xf32>
    %248 = vector.extract_strided_slice %245 {offsets = [0, 0], sizes = [8, 32], strides = [1, 1]} : vector<8x96xf32> to vector<8x32xf32>
    %249 = vector.extract_strided_slice %245 {offsets = [0, 32], sizes = [8, 32], strides = [1, 1]} : vector<8x96xf32> to vector<8x32xf32>
    %250 = vector.extract_strided_slice %245 {offsets = [0, 64], sizes = [8, 32], strides = [1, 1]} : vector<8x96xf32> to vector<8x32xf32>
    %251 = arith.mulf %249, %233 : vector<8x32xf32>
    %252 = arith.mulf %248, %247 : vector<8x32xf32>
    %253 = arith.addf %251, %252 : vector<8x32xf32>
    %254 = math.tanh %253 : vector<8x32xf32>
    %255 = arith.mulf %250, %254 : vector<8x32xf32>
    %c24_77 = arith.constant 24 : index
    %c0_78 = arith.constant 0 : index
    %256 = vector.load %arg12[%c24_77, %c0_78] : memref<64x128xf32, #tpu.memory_space<vmem>>, vector<8x128xf32>
    %257 = arith.truncf %255 : vector<8x32xf32> to vector<8x32xbf16>
    %cst_79 = arith.constant dense<0.000000e+00> : vector<8x128xf32>
    %258 = tpu.matmul %257, %193, %cst_79 {dimension_numbers = #tpu.dot_dimension_numbers<[1], [0], [0], [1], [0, 0, 1, 1], [], []>} : vector<8x32xbf16>, vector<32x128xbf16>, vector<8x128xf32> -> vector<8x128xf32>
    %259 = arith.addf %256, %258 : vector<8x128xf32>
    %260 = vector.extract_strided_slice %259 {offsets = [0, 0], sizes = [8, 96], strides = [1, 1]} : vector<8x128xf32> to vector<8x96xf32>
    %261 = arith.negf %260 : vector<8x96xf32>
    %262 = math.exp %261 : vector<8x96xf32>
    %cst_80 = arith.constant 1.000000e+00 : f32
    %263 = vector.broadcast %cst_80 : f32 to vector<8x96xf32>
    %264 = arith.addf %263, %262 : vector<8x96xf32>
    %265 = arith.divf %263, %264 : vector<8x96xf32>
    %266 = vector.extract_strided_slice %259 {offsets = [0, 96], sizes = [8, 32], strides = [1, 1]} : vector<8x128xf32> to vector<8x32xf32>
    %267 = math.tanh %266 : vector<8x32xf32>
    %268 = vector.extract_strided_slice %265 {offsets = [0, 0], sizes = [8, 32], strides = [1, 1]} : vector<8x96xf32> to vector<8x32xf32>
    %269 = vector.extract_strided_slice %265 {offsets = [0, 32], sizes = [8, 32], strides = [1, 1]} : vector<8x96xf32> to vector<8x32xf32>
    %270 = vector.extract_strided_slice %265 {offsets = [0, 64], sizes = [8, 32], strides = [1, 1]} : vector<8x96xf32> to vector<8x32xf32>
    %271 = arith.mulf %269, %253 : vector<8x32xf32>
    %272 = arith.mulf %268, %267 : vector<8x32xf32>
    %273 = arith.addf %271, %272 : vector<8x32xf32>
    %274 = math.tanh %273 : vector<8x32xf32>
    %275 = arith.mulf %270, %274 : vector<8x32xf32>
    %c32_81 = arith.constant 32 : index
    %c0_82 = arith.constant 0 : index
    %276 = vector.load %arg12[%c32_81, %c0_82] : memref<64x128xf32, #tpu.memory_space<vmem>>, vector<8x128xf32>
    %277 = arith.truncf %275 : vector<8x32xf32> to vector<8x32xbf16>
    %cst_83 = arith.constant dense<0.000000e+00> : vector<8x128xf32>
    %278 = tpu.matmul %277, %193, %cst_83 {dimension_numbers = #tpu.dot_dimension_numbers<[1], [0], [0], [1], [0, 0, 1, 1], [], []>} : vector<8x32xbf16>, vector<32x128xbf16>, vector<8x128xf32> -> vector<8x128xf32>
    %279 = arith.addf %276, %278 : vector<8x128xf32>
    %280 = vector.extract_strided_slice %279 {offsets = [0, 0], sizes = [8, 96], strides = [1, 1]} : vector<8x128xf32> to vector<8x96xf32>
    %281 = arith.negf %280 : vector<8x96xf32>
    %282 = math.exp %281 : vector<8x96xf32>
    %cst_84 = arith.constant 1.000000e+00 : f32
    %283 = vector.broadcast %cst_84 : f32 to vector<8x96xf32>
    %284 = arith.addf %283, %282 : vector<8x96xf32>
    %285 = arith.divf %283, %284 : vector<8x96xf32>
    %286 = vector.extract_strided_slice %279 {offsets = [0, 96], sizes = [8, 32], strides = [1, 1]} : vector<8x128xf32> to vector<8x32xf32>
    %287 = math.tanh %286 : vector<8x32xf32>
    %288 = vector.extract_strided_slice %285 {offsets = [0, 0], sizes = [8, 32], strides = [1, 1]} : vector<8x96xf32> to vector<8x32xf32>
    %289 = vector.extract_strided_slice %285 {offsets = [0, 32], sizes = [8, 32], strides = [1, 1]} : vector<8x96xf32> to vector<8x32xf32>
    %290 = vector.extract_strided_slice %285 {offsets = [0, 64], sizes = [8, 32], strides = [1, 1]} : vector<8x96xf32> to vector<8x32xf32>
    %291 = arith.mulf %289, %273 : vector<8x32xf32>
    %292 = arith.mulf %288, %287 : vector<8x32xf32>
    %293 = arith.addf %291, %292 : vector<8x32xf32>
    %294 = math.tanh %293 : vector<8x32xf32>
    %295 = arith.mulf %290, %294 : vector<8x32xf32>
    %c40_85 = arith.constant 40 : index
    %c0_86 = arith.constant 0 : index
    %296 = vector.load %arg12[%c40_85, %c0_86] : memref<64x128xf32, #tpu.memory_space<vmem>>, vector<8x128xf32>
    %297 = arith.truncf %295 : vector<8x32xf32> to vector<8x32xbf16>
    %cst_87 = arith.constant dense<0.000000e+00> : vector<8x128xf32>
    %298 = tpu.matmul %297, %193, %cst_87 {dimension_numbers = #tpu.dot_dimension_numbers<[1], [0], [0], [1], [0, 0, 1, 1], [], []>} : vector<8x32xbf16>, vector<32x128xbf16>, vector<8x128xf32> -> vector<8x128xf32>
    %299 = arith.addf %296, %298 : vector<8x128xf32>
    %300 = vector.extract_strided_slice %299 {offsets = [0, 0], sizes = [8, 96], strides = [1, 1]} : vector<8x128xf32> to vector<8x96xf32>
    %301 = arith.negf %300 : vector<8x96xf32>
    %302 = math.exp %301 : vector<8x96xf32>
    %cst_88 = arith.constant 1.000000e+00 : f32
    %303 = vector.broadcast %cst_88 : f32 to vector<8x96xf32>
    %304 = arith.addf %303, %302 : vector<8x96xf32>
    %305 = arith.divf %303, %304 : vector<8x96xf32>
    %306 = vector.extract_strided_slice %299 {offsets = [0, 96], sizes = [8, 32], strides = [1, 1]} : vector<8x128xf32> to vector<8x32xf32>
    %307 = math.tanh %306 : vector<8x32xf32>
    %308 = vector.extract_strided_slice %305 {offsets = [0, 0], sizes = [8, 32], strides = [1, 1]} : vector<8x96xf32> to vector<8x32xf32>
    %309 = vector.extract_strided_slice %305 {offsets = [0, 32], sizes = [8, 32], strides = [1, 1]} : vector<8x96xf32> to vector<8x32xf32>
    %310 = vector.extract_strided_slice %305 {offsets = [0, 64], sizes = [8, 32], strides = [1, 1]} : vector<8x96xf32> to vector<8x32xf32>
    %311 = arith.mulf %309, %293 : vector<8x32xf32>
    %312 = arith.mulf %308, %307 : vector<8x32xf32>
    %313 = arith.addf %311, %312 : vector<8x32xf32>
    %314 = math.tanh %313 : vector<8x32xf32>
    %315 = arith.mulf %310, %314 : vector<8x32xf32>
    %c48_89 = arith.constant 48 : index
    %c0_90 = arith.constant 0 : index
    %316 = vector.load %arg12[%c48_89, %c0_90] : memref<64x128xf32, #tpu.memory_space<vmem>>, vector<8x128xf32>
    %317 = arith.truncf %315 : vector<8x32xf32> to vector<8x32xbf16>
    %cst_91 = arith.constant dense<0.000000e+00> : vector<8x128xf32>
    %318 = tpu.matmul %317, %193, %cst_91 {dimension_numbers = #tpu.dot_dimension_numbers<[1], [0], [0], [1], [0, 0, 1, 1], [], []>} : vector<8x32xbf16>, vector<32x128xbf16>, vector<8x128xf32> -> vector<8x128xf32>
    %319 = arith.addf %316, %318 : vector<8x128xf32>
    %320 = vector.extract_strided_slice %319 {offsets = [0, 0], sizes = [8, 96], strides = [1, 1]} : vector<8x128xf32> to vector<8x96xf32>
    %321 = arith.negf %320 : vector<8x96xf32>
    %322 = math.exp %321 : vector<8x96xf32>
    %cst_92 = arith.constant 1.000000e+00 : f32
    %323 = vector.broadcast %cst_92 : f32 to vector<8x96xf32>
    %324 = arith.addf %323, %322 : vector<8x96xf32>
    %325 = arith.divf %323, %324 : vector<8x96xf32>
    %326 = vector.extract_strided_slice %319 {offsets = [0, 96], sizes = [8, 32], strides = [1, 1]} : vector<8x128xf32> to vector<8x32xf32>
    %327 = math.tanh %326 : vector<8x32xf32>
    %328 = vector.extract_strided_slice %325 {offsets = [0, 0], sizes = [8, 32], strides = [1, 1]} : vector<8x96xf32> to vector<8x32xf32>
    %329 = vector.extract_strided_slice %325 {offsets = [0, 32], sizes = [8, 32], strides = [1, 1]} : vector<8x96xf32> to vector<8x32xf32>
    %330 = vector.extract_strided_slice %325 {offsets = [0, 64], sizes = [8, 32], strides = [1, 1]} : vector<8x96xf32> to vector<8x32xf32>
    %331 = arith.mulf %329, %313 : vector<8x32xf32>
    %332 = arith.mulf %328, %327 : vector<8x32xf32>
    %333 = arith.addf %331, %332 : vector<8x32xf32>
    %334 = math.tanh %333 : vector<8x32xf32>
    %335 = arith.mulf %330, %334 : vector<8x32xf32>
    %c56_93 = arith.constant 56 : index
    %c0_94 = arith.constant 0 : index
    %336 = vector.load %arg12[%c56_93, %c0_94] : memref<64x128xf32, #tpu.memory_space<vmem>>, vector<8x128xf32>
    %337 = arith.truncf %335 : vector<8x32xf32> to vector<8x32xbf16>
    %cst_95 = arith.constant dense<0.000000e+00> : vector<8x128xf32>
    %338 = tpu.matmul %337, %193, %cst_95 {dimension_numbers = #tpu.dot_dimension_numbers<[1], [0], [0], [1], [0, 0, 1, 1], [], []>} : vector<8x32xbf16>, vector<32x128xbf16>, vector<8x128xf32> -> vector<8x128xf32>
    %339 = arith.addf %336, %338 : vector<8x128xf32>
    %340 = vector.extract_strided_slice %339 {offsets = [0, 0], sizes = [8, 96], strides = [1, 1]} : vector<8x128xf32> to vector<8x96xf32>
    %341 = arith.negf %340 : vector<8x96xf32>
    %342 = math.exp %341 : vector<8x96xf32>
    %cst_96 = arith.constant 1.000000e+00 : f32
    %343 = vector.broadcast %cst_96 : f32 to vector<8x96xf32>
    %344 = arith.addf %343, %342 : vector<8x96xf32>
    %345 = arith.divf %343, %344 : vector<8x96xf32>
    %346 = vector.extract_strided_slice %339 {offsets = [0, 96], sizes = [8, 32], strides = [1, 1]} : vector<8x128xf32> to vector<8x32xf32>
    %347 = math.tanh %346 : vector<8x32xf32>
    %348 = vector.extract_strided_slice %345 {offsets = [0, 0], sizes = [8, 32], strides = [1, 1]} : vector<8x96xf32> to vector<8x32xf32>
    %349 = vector.extract_strided_slice %345 {offsets = [0, 32], sizes = [8, 32], strides = [1, 1]} : vector<8x96xf32> to vector<8x32xf32>
    %350 = vector.extract_strided_slice %345 {offsets = [0, 64], sizes = [8, 32], strides = [1, 1]} : vector<8x96xf32> to vector<8x32xf32>
    %351 = arith.mulf %349, %333 : vector<8x32xf32>
    %352 = arith.mulf %348, %347 : vector<8x32xf32>
    %353 = arith.addf %351, %352 : vector<8x32xf32>
    %354 = math.tanh %353 : vector<8x32xf32>
    %355 = arith.mulf %350, %354 : vector<8x32xf32>
    %cst_97 = arith.constant 0.000000e+00 : f32
    %356 = vector.broadcast %cst_97 : f32 to vector<8x32xf32>
    %357 = arith.maximumf %355, %356 : vector<8x32xf32>
    %358 = arith.truncf %357 : vector<8x32xf32> to vector<8x32xbf16>
    %c0_98 = arith.constant 0 : index
    %c0_99 = arith.constant 0 : index
    %359 = vector.load %arg7[%c0_98, %c0_99] : memref<32x64xbf16, #tpu.memory_space<vmem>>, vector<32x64xbf16>
    %cst_100 = arith.constant dense<0.000000e+00> : vector<8x64xf32>
    %360 = tpu.matmul %358, %359, %cst_100 {dimension_numbers = #tpu.dot_dimension_numbers<[1], [0], [0], [1], [0, 0, 1, 1], [], []>} : vector<8x32xbf16>, vector<32x64xbf16>, vector<8x64xf32> -> vector<8x64xf32>
    %c0_101 = arith.constant 0 : index
    %c0_102 = arith.constant 0 : index
    %361 = vector.load %arg8[%c0_101, %c0_102] : memref<1x64xf32, #tpu.memory_space<vmem>>, vector<1x64xf32>
    %362 = vector.broadcast %361 : vector<1x64xf32> to vector<8x64xf32>
    %363 = arith.addf %360, %362 : vector<8x64xf32>
    %cst_103 = arith.constant 0.000000e+00 : f32
    %364 = vector.broadcast %cst_103 : f32 to vector<8x64xf32>
    %365 = arith.maximumf %363, %364 : vector<8x64xf32>
    %366 = arith.truncf %365 : vector<8x64xf32> to vector<8x64xbf16>
    %c0_104 = arith.constant 0 : index
    %c0_105 = arith.constant 0 : index
    %367 = vector.load %arg9[%c0_104, %c0_105] : memref<64x4xbf16, #tpu.memory_space<vmem>>, vector<64x4xbf16>
    %cst_106 = arith.constant dense<0.000000e+00> : vector<8x4xf32>
    %368 = tpu.matmul %366, %367, %cst_106 {dimension_numbers = #tpu.dot_dimension_numbers<[1], [0], [0], [1], [0, 0, 1, 1], [], []>} : vector<8x64xbf16>, vector<64x4xbf16>, vector<8x4xf32> -> vector<8x4xf32>
    %c0_107 = arith.constant 0 : index
    %c0_108 = arith.constant 0 : index
    %369 = vector.load %arg10[%c0_107, %c0_108] : memref<1x4xf32, #tpu.memory_space<vmem>>, vector<1x4xf32>
    %370 = vector.broadcast %369 : vector<1x4xf32> to vector<8x4xf32>
    %371 = arith.addf %368, %370 : vector<8x4xf32>
    %c0_109 = arith.constant 0 : index
    %c0_110 = arith.constant 0 : index
    %372 = vector.load %arg11[%c0_109, %c0_110] : memref<8x4xf32, #tpu.memory_space<vmem>>, vector<8x4xf32>
    tpu.vector_store %arg11[%c0_109, %c0_110], %371 {strides = array<i32>} : memref<8x4xf32, #tpu.memory_space<vmem>>, vector<8x4xf32>,
    return
  }
}

</mosaic_0001>

<llo_original>
// kernel: lstm_model_forward.1
$region0: #{lstm_model_forward.1}
  #allocation0 [shape = 'u32[]', space=smem, size = 0x4, offset = 0x4, fixed_abs, tag = 'smem constant byte address 0x4 - core index']
  #allocation1 [shape = 'u32[144,128]{1,0:T(1,128)}', space=vmem, size = 0x12000, scoped, tag = 'internal scratch']
  #allocation2 [shape = 'f32[64,128]{1,0:T(8,128)}', space=vmem, size = 0x8000, scoped, tag = 'scratch operand']
  #allocation3 [shape = 'bf16[64,32]{1,0:T(8,128)(2,1)}', space=vmem, size = 0x4000, scoped, tag = 'scratch operand']
  %s0 = inlined_call_operand.vmem [shape: bf16[64,16], index: 0, kind: input, shape index: {}]
  %s1 = inlined_call_operand.vmem [shape: bf16[16,128], index: 1, kind: input, shape index: {}]
  %s2 = inlined_call_operand.vmem [shape: bf16[32,128], index: 2, kind: input, shape index: {}]
  %s3 = inlined_call_operand.vmem [shape: f32[1,128], index: 3, kind: input, shape index: {}]
  %s4 = inlined_call_operand.vmem [shape: bf16[32,128], index: 4, kind: input, shape index: {}]
  %s5 = inlined_call_operand.vmem [shape: bf16[32,128], index: 5, kind: input, shape index: {}]
  %s6 = inlined_call_operand.vmem [shape: f32[1,128], index: 6, kind: input, shape index: {}]
  %s7 = inlined_call_operand.vmem [shape: bf16[32,64], index: 7, kind: input, shape index: {}]
  %s8 = inlined_call_operand.vmem [shape: f32[1,64], index: 8, kind: input, shape index: {}]
  %s9 = inlined_call_operand.vmem [shape: bf16[64,4], index: 9, kind: input, shape index: {}]
  %s10 = inlined_call_operand.vmem [shape: f32[1,4], index: 10, kind: input, shape index: {}]
  %s11 = inlined_call_operand.vmem [shape: f32[8,4], index: 11, kind: output, shape index: {}]
  %s12 = sld [smem:[#allocation0]]
  $region54: #{lstm_model_forward.1} parent=0
    _
  %s14 = ssub.s32 1, %s12
  %s15 = scalar_select 0, %s14, %s12
  // Predicated region
  $region2: #{lstm_model_forward.1} parent=0 // pred_check
    _
  $region3: #{lstm_model_forward.1} parent=0 // pred_check_branch
    %17 = sbr.rel (0) target = $region5
  $region4: #{lstm_model_forward.1} parent=0 // pred_region
    _
  $region5: #{lstm_model_forward.1} parent=0 // pred_fallthru
    _
  // Predicated region
  $region6: #{lstm_model_forward.1} parent=0 // pred_check
    _
  $region7: #{lstm_model_forward.1} parent=0 // pred_check_branch
    %19 = sbr.rel (0) target = $region9
  $region8: #{lstm_model_forward.1} parent=0 // pred_region
    _
  $region9: #{lstm_model_forward.1} parent=0 // pred_fallthru
    _
  // Predicated region
  $region10: #{lstm_model_forward.1} parent=0 // pred_check
    _
  $region11: #{lstm_model_forward.1} parent=0 // pred_check_branch
    %21 = sbr.rel (0) target = $region13
  $region12: #{lstm_model_forward.1} parent=0 // pred_region
    _
  $region13: #{lstm_model_forward.1} parent=0 // pred_fallthru
    _
  // Predicated region
  $region14: #{lstm_model_forward.1} parent=0 // pred_check
    _
  $region15: #{lstm_model_forward.1} parent=0 // pred_check_branch
    %23 = sbr.rel (0) target = $region17
  $region16: #{lstm_model_forward.1} parent=0 // pred_region
    _
  $region17: #{lstm_model_forward.1} parent=0 // pred_fallthru
    _
  // Predicated region
  $region18: #{lstm_model_forward.1} parent=0 // pred_check
    _
  $region19: #{lstm_model_forward.1} parent=0 // pred_check_branch
    %25 = sbr.rel (0) target = $region21
  $region20: #{lstm_model_forward.1} parent=0 // pred_region
    _
  $region21: #{lstm_model_forward.1} parent=0 // pred_fallthru
    _
  // Predicated region
  $region22: #{lstm_model_forward.1} parent=0 // pred_check
    _
  $region23: #{lstm_model_forward.1} parent=0 // pred_check_branch
    %27 = sbr.rel (0) target = $region25
  $region24: #{lstm_model_forward.1} parent=0 // pred_region
    _
  $region25: #{lstm_model_forward.1} parent=0 // pred_fallthru
    _
  // Predicated region
  $region26: #{lstm_model_forward.1} parent=0 // pred_check
    _
  $region27: #{lstm_model_forward.1} parent=0 // pred_check_branch
    %29 = sbr.rel (0) target = $region29
  $region28: #{lstm_model_forward.1} parent=0 // pred_region
    _
  $region29: #{lstm_model_forward.1} parent=0 // pred_fallthru
    _
  // Predicated region
  $region30: #{lstm_model_forward.1} parent=0 // pred_check
    _
  $region31: #{lstm_model_forward.1} parent=0 // pred_check_branch
    %31 = sbr.rel (0) target = $region33
  $region32: #{lstm_model_forward.1} parent=0 // pred_region
    _
  $region33: #{lstm_model_forward.1} parent=0 // pred_fallthru
    _
  // Predicated region
  $region34: #{lstm_model_forward.1} parent=0 // pred_check
    _
  $region35: #{lstm_model_forward.1} parent=0 // pred_check_branch
    %33 = sbr.rel (0) target = $region37
  $region36: #{lstm_model_forward.1} parent=0 // pred_region
    _
  $region37: #{lstm_model_forward.1} parent=0 // pred_fallthru
    _
  // Predicated region
  $region38: #{lstm_model_forward.1} parent=0 // pred_check
    _
  $region39: #{lstm_model_forward.1} parent=0 // pred_check_branch
    %35 = sbr.rel (0) target = $region41
  $region40: #{lstm_model_forward.1} parent=0 // pred_region
    _
  $region41: #{lstm_model_forward.1} parent=0 // pred_fallthru
    _
  // Predicated region
  $region42: #{lstm_model_forward.1} parent=0 // pred_check
    _
  $region43: #{lstm_model_forward.1} parent=0 // pred_check_branch
    %37 = sbr.rel (0) target = $region45
  $region44: #{lstm_model_forward.1} parent=0 // pred_region
    _
  $region45: #{lstm_model_forward.1} parent=0 // pred_fallthru
    _
  %v39 = vld [vmem:[%s0] sm:$0xf]
  %v40 = vld [vmem:[%s0 + $0x4] sm:$0xf]
  %v41 = vld [vmem:[%s0 + $0x8] sm:$0xf]
  %v42 = vld [vmem:[%s0 + $0xc] sm:$0xf]
  %v43 = vld [vmem:[%s0 + $0x10] sm:$0xf]
  %v44 = vld [vmem:[%s0 + $0x14] sm:$0xf]
  %v45 = vld [vmem:[%s0 + $0x18] sm:$0xf]
  %v46 = vld [vmem:[%s0 + $0x1c] sm:$0xf]
  %v47 = vld [vmem:[%s1] sm:$0xf]
  %v48 = vld [vmem:[%s1 + $0x4] sm:$0xf]
  %v49 = vld [vmem:[%s3] sm:$0x1]
  %v51 = vlaneseq
  %v52 = vshrl.u32 %v51, 7
  %v53 = vsub.s32 0, %v52
  %v54 = vrot.slane %v49, %v53
  %v64 = vunpack.c.l.b16 %v39
  %v65 = vunpack.c.l.b16 %v40
  %v66 = vunpack.c.l.b16 %v41
  %v67 = vunpack.c.l.b16 %v42
  %v68 = vunpack.c.l.b16 %v43
  %v69 = vunpack.c.l.b16 %v44
  %v70 = vunpack.c.l.b16 %v45
  %v71 = vunpack.c.l.b16 %v46
  %v72 = vpack.c.b16 %v65, %v64
  %v73 = vpack.c.b16 %v67, %v66
  %v74 = vpack.c.b16 %v69, %v68
  %v75 = vpack.c.b16 %v71, %v70
  %v78 = vunpack.c.l.b16 %v47
  %v79 = vunpack.c.l.b16 %v48
  %v80 = vpack.c.b16 %v79, %v78
  %vm82 = vcmask 130048
  %v84 = vsel %vm82, %v72, 0
  %v87 = vsel %vm82, %v73, 0
  %v90 = vsel %vm82, %v74, 0
  %v93 = vsel %vm82, %v75, 0
  %95 = vmatprep.subr.bf16.mxu0 0
  %96 = vmatpush1.bf16.msra.mxu0 0
  %97 = vmatprep.subr.bf16.mxu0 0
  %98 = vmatpush1.bf16.msra.mxu0 0
  %99 = vmatprep.subr.bf16.mxu0 0
  %100 = vmatpush1.bf16.msra.mxu0 0
  %101 = vmatprep.subr.bf16.mxu0 0
  %102 = vmatpush1.bf16.msra.mxu0 0
  %103 = vmatprep.subr.bf16.mxu0 0
  %104 = vmatpush1.bf16.msra.mxu0 0
  %105 = vmatprep.subr.bf16.mxu0 0
  %106 = vmatpush1.bf16.msra.mxu0 0
  %107 = vmatprep.subr.bf16.mxu0 0
  %108 = vmatpush1.bf16.msra.mxu0 0
  %109 = vmatprep.subr.bf16.mxu0 0
  %110 = vmatpush1.bf16.msra.mxu0 %v80
  %111 = vmatprep.subr.bf16.mxu0 0
  %112 = vmatpush2.bf16.msra.mxu0 0
  %113 = vmatprep.subr.bf16.mxu0 0
  %114 = vmatpush2.bf16.msra.mxu0 0
  %115 = vmatprep.subr.bf16.mxu0 0
  %116 = vmatpush2.bf16.msra.mxu0 0
  %117 = vmatprep.subr.bf16.mxu0 0
  %118 = vmatpush2.bf16.msra.mxu0 0
  %119 = vmatprep.subr.bf16.mxu0 0
  %120 = vmatpush2.bf16.msra.mxu0 0
  %121 = vmatprep.subr.bf16.mxu0 0
  %122 = vmatpush2.bf16.msra.mxu0 0
  %123 = vmatprep.subr.bf16.mxu0 0
  %124 = vmatpush2.bf16.msra.mxu0 0
  %125 = vmatprep.subr.bf16.mxu0 0
  %126 = vmatpush2.bf16.msra.mxu0 0
  %127 = vmatprep.mubr.bf16.mxu0 0
  %128 = vmatmul.mubr.bf16.gmra.mxu0 %v84
  %v129 = vpop.f32.mrf.mxu0
  %v130 = vadd.f32 %v54, %v129
  %v131 = vpop.f32.mrf.mxu0
  %v132 = vpop.f32.mrf.mxu0
  %v133 = vadd.f32 %v54, %v132
  %v134 = vpop.f32.mrf.mxu0
  %135 = vmatprep.mubr.bf16.mxu0 0
  %136 = vmatmul.mubr.bf16.gmra.mxu0 %v87
  %v137 = vpop.f32.mrf.mxu0
  %v138 = vadd.f32 %v54, %v137
  %v139 = vpop.f32.mrf.mxu0
  %v140 = vpop.f32.mrf.mxu0
  %v141 = vadd.f32 %v54, %v140
  %v142 = vpop.f32.mrf.mxu0
  %143 = vmatprep.mubr.bf16.mxu0 0
  %144 = vmatmul.mubr.bf16.gmra.mxu0 %v90
  %v145 = vpop.f32.mrf.mxu0
  %v146 = vadd.f32 %v54, %v145
  %v147 = vpop.f32.mrf.mxu0
  %v148 = vpop.f32.mrf.mxu0
  %v149 = vadd.f32 %v54, %v148
  %v150 = vpop.f32.mrf.mxu0
  %151 = vmatprep.mubr.bf16.mxu0 0
  %152 = vmatmul.mubr.bf16.gmra.mxu0 %v93
  %v153 = vpop.f32.mrf.mxu0
  %v154 = vadd.f32 %v54, %v153
  %v155 = vpop.f32.mrf.mxu0
  %v156 = vpop.f32.mrf.mxu0
  %v157 = vadd.f32 %v54, %v156
  %v158 = vpop.f32.mrf.mxu0
  %159 = vdwg.mxu0
  %160 = vst [vmem:[#allocation2] sm:$0xff] %v130
  %161 = vst [vmem:[#allocation2 + $0x8] sm:$0xff] %v133
  %162 = vst [vmem:[#allocation2 + $0x10] sm:$0xff] %v138
  %163 = vst [vmem:[#allocation2 + $0x18] sm:$0xff] %v141
  %164 = vst [vmem:[#allocation2 + $0x20] sm:$0xff] %v146
  %165 = vst [vmem:[#allocation2 + $0x28] sm:$0xff] %v149
  %166 = vst [vmem:[#allocation2 + $0x30] sm:$0xff] %v154
  %167 = vst [vmem:[#allocation2 + $0x38] sm:$0xff] %v157
  %v168 = vld [vmem:[%s2] sm:$0xf]
  %v169 = vld [vmem:[%s2 + $0x4] sm:$0xf]
  %v170 = vld [vmem:[%s2 + $0x8] sm:$0xf]
  %v171 = vld [vmem:[%s2 + $0xc] sm:$0xf]
  %v172 = vld [vmem:[#allocation2] sm:$0xff]
  %v177 = vunpack.c.l.b16 %v168
  %v178 = vunpack.c.l.b16 %v169
  %v179 = vunpack.c.l.b16 %v170
  %v180 = vunpack.c.l.b16 %v171
  %v181 = vpack.c.b16 %v178, %v177
  %v182 = vpack.c.b16 %v180, %v179
  %vm185 = vcmask 261120
  %v187 = vsel %vm185, 0, 0
  %189 = vmatprep.subr.bf16.mxu0 0
  %190 = vmatpush1.bf16.msra.mxu0 0
  %191 = vmatprep.subr.bf16.mxu0 0
  %192 = vmatpush1.bf16.msra.mxu0 0
  %193 = vmatprep.subr.bf16.mxu0 0
  %194 = vmatpush1.bf16.msra.mxu0 0
  %195 = vmatprep.subr.bf16.mxu0 0
  %196 = vmatpush1.bf16.msra.mxu0 0
  %197 = vmatprep.subr.bf16.mxu0 0
  %198 = vmatpush1.bf16.msra.mxu0 0
  %199 = vmatprep.subr.bf16.mxu0 0
  %200 = vmatpush1.bf16.msra.mxu0 0
  %201 = vmatprep.subr.bf16.mxu0 0
  %202 = vmatpush1.bf16.msra.mxu0 %v182
  %203 = vmatprep.subr.bf16.mxu0 0
  %204 = vmatpush1.bf16.msra.mxu0 %v181
  %205 = vmatprep.subr.bf16.mxu0 0
  %206 = vmatpush2.bf16.msra.mxu0 0
  %207 = vmatprep.subr.bf16.mxu0 0
  %208 = vmatpush2.bf16.msra.mxu0 0
  %209 = vmatprep.subr.bf16.mxu0 0
  %210 = vmatpush2.bf16.msra.mxu0 0
  %211 = vmatprep.subr.bf16.mxu0 0
  %212 = vmatpush2.bf16.msra.mxu0 0
  %213 = vmatprep.subr.bf16.mxu0 0
  %214 = vmatpush2.bf16.msra.mxu0 0
  %215 = vmatprep.subr.bf16.mxu0 0
  %216 = vmatpush2.bf16.msra.mxu0 0
  %217 = vmatprep.subr.bf16.mxu0 0
  %218 = vmatpush2.bf16.msra.mxu0 0
  %219 = vmatprep.subr.bf16.mxu0 0
  %220 = vmatpush2.bf16.msra.mxu0 0
  %221 = vmatprep.mubr.bf16.mxu0 0
  %222 = vmatmul.mubr.bf16.gmra.mxu0 %v187
  %v223 = vpop.f32.mrf.mxu0
  %v224 = vadd.f32 0.0, %v223
  %v225 = vpop.f32.mrf.mxu0
  %v226 = vpop.f32.mrf.mxu0
  %v227 = vpop.f32.mrf.mxu0
  %228 = vdwg.mxu0
  %v229 = vadd.f32 %v172, %v224
  %v230 = vxor.u32 %v229, 2147483648
  %v231 = vmul.f32 %v230, 1.442695
  %v232 = vpow.pop %v231
  %v233 = vadd.f32 %v232, 1.0
  %v234 = vrcp.pop %v233
  %v235 = vmul.f32 1.0, %v234
  %v236 = vtanh.pop %v229
  %v237 = vmul.f32 %v235, 0.0
  %239 = vrot.lane.b32.xlu0 %v236, 32
  %v240 = vpop.permute.xlu0 %239
  %v242 = vmul.f32 %v235, %v240
  %244 = vrot.lane.b32.xlu0 %v242, 32
  %v245 = vpop.permute.xlu0 %244
  %v247 = vadd.f32 %v237, %v245
  %v248 = vtanh.pop %v247
  %250 = vrot.lane.b32.xlu0 %v248, 32
  %v251 = vpop.permute.xlu0 %250
  %v253 = vmul.f32 %v235, %v251
  %v254 = vpack.c.bf16 %v253, %v253
  %v256 = vunpack.c.l.b16 %v254
  %v257 = vpack.c.b16 %v256, %v256
  %258 = vrot.lane.b32.xlu0 %v257, 64
  %v259 = vpop.permute.xlu0 %258
  %vm261 = vcmask 257024
  %262 = vst.msk [vmem:[#allocation3] sm:$0xf] %vm261, %v259
  %v263 = vld [vmem:[#allocation2 + $0x8] sm:$0xff]
  %264 = vrot.lane.b32.xlu0 %v254, 64
  %v265 = vpop.permute.xlu0 %264
  %v267 = vsel %vm185, %v265, 0
  %269 = vmatprep.subr.bf16.mxu0 0
  %270 = vmatpush1.bf16.msra.mxu0 0
  %271 = vmatprep.subr.bf16.mxu0 0
  %272 = vmatpush1.bf16.msra.mxu0 0
  %273 = vmatprep.subr.bf16.mxu0 0
  %274 = vmatpush1.bf16.msra.mxu0 0
  %275 = vmatprep.subr.bf16.mxu0 0
  %276 = vmatpush1.bf16.msra.mxu0 0
  %277 = vmatprep.subr.bf16.mxu0 0
  %278 = vmatpush1.bf16.msra.mxu0 0
  %279 = vmatprep.subr.bf16.mxu0 0
  %280 = vmatpush1.bf16.msra.mxu0 0
  %281 = vmatprep.subr.bf16.mxu0 0
  %282 = vmatpush1.bf16.msra.mxu0 %v182
  %283 = vmatprep.subr.bf16.mxu0 0
  %284 = vmatpush1.bf16.msra.mxu0 %v181
  %285 = vmatprep.subr.bf16.mxu0 0
  %286 = vmatpush2.bf16.msra.mxu0 0
  %287 = vmatprep.subr.bf16.mxu0 0
  %288 = vmatpush2.bf16.msra.mxu0 0
  %289 = vmatprep.subr.bf16.mxu0 0
  %290 = vmatpush2.bf16.msra.mxu0 0
  %291 = vmatprep.subr.bf16.mxu0 0
  %292 = vmatpush2.bf16.msra.mxu0 0
  %293 = vmatprep.subr.bf16.mxu0 0
  %294 = vmatpush2.bf16.msra.mxu0 0
  %295 = vmatprep.subr.bf16.mxu0 0
  %296 = vmatpush2.bf16.msra.mxu0 0
  %297 = vmatprep.subr.bf16.mxu0 0
  %298 = vmatpush2.bf16.msra.mxu0 0
  %299 = vmatprep.subr.bf16.mxu0 0
  %300 = vmatpush2.bf16.msra.mxu0 0
  %301 = vmatprep.mubr.bf16.mxu0 0
  %302 = vmatmul.mubr.bf16.gmra.mxu0 %v267
  %v303 = vpop.f32.mrf.mxu0
  %v304 = vadd.f32 0.0, %v303
  %v305 = vpop.f32.mrf.mxu0
  %v306 = vpop.f32.mrf.mxu0
  %v307 = vpop.f32.mrf.mxu0
  %308 = vdwg.mxu0
  %v309 = vadd.f32 %v263, %v304
  %v310 = vxor.u32 %v309, 2147483648
  %v311 = vmul.f32 %v310, 1.442695
  %v312 = vpow.pop %v311
  %v313 = vadd.f32 %v312, 1.0
  %v314 = vrcp.pop %v313
  %v315 = vmul.f32 1.0, %v314
  %v316 = vtanh.pop %v309
  %v317 = vmul.f32 %v315, %v247
  %319 = vrot.lane.b32.xlu0 %v316, 32
  %v320 = vpop.permute.xlu0 %319
  %v322 = vmul.f32 %v315, %v320
  %324 = vrot.lane.b32.xlu0 %v322, 32
  %v325 = vpop.permute.xlu0 %324
  %v327 = vadd.f32 %v317, %v325
  %v328 = vtanh.pop %v327
  %330 = vrot.lane.b32.xlu0 %v328, 32
  %v331 = vpop.permute.xlu0 %330
  %v333 = vmul.f32 %v315, %v331
  %v334 = vpack.c.bf16 %v333, %v333
  %v336 = vunpack.c.l.b16 %v334
  %v337 = vpack.c.b16 %v336, %v336
  %338 = vrot.lane.b32.xlu0 %v337, 64
  %v339 = vpop.permute.xlu0 %338
  %341 = vst.msk [vmem:[#allocation3 + $0x4] sm:$0xf] %vm261, %v339
  %v342 = vld [vmem:[#allocation2 + $0x10] sm:$0xff]
  %343 = vrot.lane.b32.xlu0 %v334, 64
  %v344 = vpop.permute.xlu0 %343
  %v346 = vsel %vm185, %v344, 0
  %348 = vmatprep.subr.bf16.mxu0 0
  %349 = vmatpush1.bf16.msra.mxu0 0
  %350 = vmatprep.subr.bf16.mxu0 0
  %351 = vmatpush1.bf16.msra.mxu0 0
  %352 = vmatprep.subr.bf16.mxu0 0
  %353 = vmatpush1.bf16.msra.mxu0 0
  %354 = vmatprep.subr.bf16.mxu0 0
  %355 = vmatpush1.bf16.msra.mxu0 0
  %356 = vmatprep.subr.bf16.mxu0 0
  %357 = vmatpush1.bf16.msra.mxu0 0
  %358 = vmatprep.subr.bf16.mxu0 0
  %359 = vmatpush1.bf16.msra.mxu0 0
  %360 = vmatprep.subr.bf16.mxu0 0
  %361 = vmatpush1.bf16.msra.mxu0 %v182
  %362 = vmatprep.subr.bf16.mxu0 0
  %363 = vmatpush1.bf16.msra.mxu0 %v181
  %364 = vmatprep.subr.bf16.mxu0 0
  %365 = vmatpush2.bf16.msra.mxu0 0
  %366 = vmatprep.subr.bf16.mxu0 0
  %367 = vmatpush2.bf16.msra.mxu0 0
  %368 = vmatprep.subr.bf16.mxu0 0
  %369 = vmatpush2.bf16.msra.mxu0 0
  %370 = vmatprep.subr.bf16.mxu0 0
  %371 = vmatpush2.bf16.msra.mxu0 0
  %372 = vmatprep.subr.bf16.mxu0 0
  %373 = vmatpush2.bf16.msra.mxu0 0
  %374 = vmatprep.subr.bf16.mxu0 0
  %375 = vmatpush2.bf16.msra.mxu0 0
  %376 = vmatprep.subr.bf16.mxu0 0
  %377 = vmatpush2.bf16.msra.mxu0 0
  %378 = vmatprep.subr.bf16.mxu0 0
  %379 = vmatpush2.bf16.msra.mxu0 0
  %380 = vmatprep.mubr.bf16.mxu0 0
  %381 = vmatmul.mubr.bf16.gmra.mxu0 %v346
  %v382 = vpop.f32.mrf.mxu0
  %v383 = vadd.f32 0.0, %v382
  %v384 = vpop.f32.mrf.mxu0
  %v385 = vpop.f32.mrf.mxu0
  %v386 = vpop.f32.mrf.mxu0
  %387 = vdwg.mxu0
  %v388 = vadd.f32 %v342, %v383
  %v389 = vxor.u32 %v388, 2147483648
  %v390 = vmul.f32 %v389, 1.442695
  %v391 = vpow.pop %v390
  %v392 = vadd.f32 %v391, 1.0
  %v393 = vrcp.pop %v392
  %v394 = vmul.f32 1.0, %v393
  %v395 = vtanh.pop %v388
  %v396 = vmul.f32 %v394, %v327
  %398 = vrot.lane.b32.xlu0 %v395, 32
  %v399 = vpop.permute.xlu0 %398
  %v401 = vmul.f32 %v394, %v399
  %403 = vrot.lane.b32.xlu0 %v401, 32
  %v404 = vpop.permute.xlu0 %403
  %v406 = vadd.f32 %v396, %v404
  %v407 = vtanh.pop %v406
  %409 = vrot.lane.b32.xlu0 %v407, 32
  %v410 = vpop.permute.xlu0 %409
  %v412 = vmul.f32 %v394, %v410
  %v413 = vpack.c.bf16 %v412, %v412
  %v415 = vunpack.c.l.b16 %v413
  %v416 = vpack.c.b16 %v415, %v415
  %417 = vrot.lane.b32.xlu0 %v416, 64
  %v418 = vpop.permute.xlu0 %417
  %420 = vst.msk [vmem:[#allocation3 + $0x8] sm:$0xf] %vm261, %v418
  %v421 = vld [vmem:[#allocation2 + $0x18] sm:$0xff]
  %422 = vrot.lane.b32.xlu0 %v413, 64
  %v423 = vpop.permute.xlu0 %422
  %v425 = vsel %vm185, %v423, 0
  %427 = vmatprep.subr.bf16.mxu0 0
  %428 = vmatpush1.bf16.msra.mxu0 0
  %429 = vmatprep.subr.bf16.mxu0 0
  %430 = vmatpush1.bf16.msra.mxu0 0
  %431 = vmatprep.subr.bf16.mxu0 0
  %432 = vmatpush1.bf16.msra.mxu0 0
  %433 = vmatprep.subr.bf16.mxu0 0
  %434 = vmatpush1.bf16.msra.mxu0 0
  %435 = vmatprep.subr.bf16.mxu0 0
  %436 = vmatpush1.bf16.msra.mxu0 0
  %437 = vmatprep.subr.bf16.mxu0 0
  %438 = vmatpush1.bf16.msra.mxu0 0
  %439 = vmatprep.subr.bf16.mxu0 0
  %440 = vmatpush1.bf16.msra.mxu0 %v182
  %441 = vmatprep.subr.bf16.mxu0 0
  %442 = vmatpush1.bf16.msra.mxu0 %v181
  %443 = vmatprep.subr.bf16.mxu0 0
  %444 = vmatpush2.bf16.msra.mxu0 0
  %445 = vmatprep.subr.bf16.mxu0 0
  %446 = vmatpush2.bf16.msra.mxu0 0
  %447 = vmatprep.subr.bf16.mxu0 0
  %448 = vmatpush2.bf16.msra.mxu0 0
  %449 = vmatprep.subr.bf16.mxu0 0
  %450 = vmatpush2.bf16.msra.mxu0 0
  %451 = vmatprep.subr.bf16.mxu0 0
  %452 = vmatpush2.bf16.msra.mxu0 0
  %453 = vmatprep.subr.bf16.mxu0 0
  %454 = vmatpush2.bf16.msra.mxu0 0
  %455 = vmatprep.subr.bf16.mxu0 0
  %456 = vmatpush2.bf16.msra.mxu0 0
  %457 = vmatprep.subr.bf16.mxu0 0
  %458 = vmatpush2.bf16.msra.mxu0 0
  %459 = vmatprep.mubr.bf16.mxu0 0
  %460 = vmatmul.mubr.bf16.gmra.mxu0 %v425
  %v461 = vpop.f32.mrf.mxu0
  %v462 = vadd.f32 0.0, %v461
  %v463 = vpop.f32.mrf.mxu0
  %v464 = vpop.f32.mrf.mxu0
  %v465 = vpop.f32.mrf.mxu0
  %466 = vdwg.mxu0
  %v467 = vadd.f32 %v421, %v462
  %v468 = vxor.u32 %v467, 2147483648
  %v469 = vmul.f32 %v468, 1.442695
  %v470 = vpow.pop %v469
  %v471 = vadd.f32 %v470, 1.0
  %v472 = vrcp.pop %v471
  %v473 = vmul.f32 1.0, %v472
  %v474 = vtanh.pop %v467
  %v475 = vmul.f32 %v473, %v406
  %477 = vrot.lane.b32.xlu0 %v474, 32
  %v478 = vpop.permute.xlu0 %477
  %v480 = vmul.f32 %v473, %v478
  %482 = vrot.lane.b32.xlu0 %v480, 32
  %v483 = vpop.permute.xlu0 %482
  %v485 = vadd.f32 %v475, %v483
  %v486 = vtanh.pop %v485
  %488 = vrot.lane.b32.xlu0 %v486, 32
  %v489 = vpop.permute.xlu0 %488
  %v491 = vmul.f32 %v473, %v489
  %v492 = vpack.c.bf16 %v491, %v491
  %v494 = vunpack.c.l.b16 %v492
  %v495 = vpack.c.b16 %v494, %v494
  %496 = vrot.lane.b32.xlu0 %v495, 64
  %v497 = vpop.permute.xlu0 %496
  %499 = vst.msk [vmem:[#allocation3 + $0xc] sm:$0xf] %vm261, %v497
  %v500 = vld [vmem:[#allocation2 + $0x20] sm:$0xff]
  %501 = vrot.lane.b32.xlu0 %v492, 64
  %v502 = vpop.permute.xlu0 %501
  %v504 = vsel %vm185, %v502, 0
  %506 = vmatprep.subr.bf16.mxu0 0
  %507 = vmatpush1.bf16.msra.mxu0 0
  %508 = vmatprep.subr.bf16.mxu0 0
  %509 = vmatpush1.bf16.msra.mxu0 0
  %510 = vmatprep.subr.bf16.mxu0 0
  %511 = vmatpush1.bf16.msra.mxu0 0
  %512 = vmatprep.subr.bf16.mxu0 0
  %513 = vmatpush1.bf16.msra.mxu0 0
  %514 = vmatprep.subr.bf16.mxu0 0
  %515 = vmatpush1.bf16.msra.mxu0 0
  %516 = vmatprep.subr.bf16.mxu0 0
  %517 = vmatpush1.bf16.msra.mxu0 0
  %518 = vmatprep.subr.bf16.mxu0 0
  %519 = vmatpush1.bf16.msra.mxu0 %v182
  %520 = vmatprep.subr.bf16.mxu0 0
  %521 = vmatpush1.bf16.msra.mxu0 %v181
  %522 = vmatprep.subr.bf16.mxu0 0
  %523 = vmatpush2.bf16.msra.mxu0 0
  %524 = vmatprep.subr.bf16.mxu0 0
  %525 = vmatpush2.bf16.msra.mxu0 0
  %526 = vmatprep.subr.bf16.mxu0 0
  %527 = vmatpush2.bf16.msra.mxu0 0
  %528 = vmatprep.subr.bf16.mxu0 0
  %529 = vmatpush2.bf16.msra.mxu0 0
  %530 = vmatprep.subr.bf16.mxu0 0
  %531 = vmatpush2.bf16.msra.mxu0 0
  %532 = vmatprep.subr.bf16.mxu0 0
  %533 = vmatpush2.bf16.msra.mxu0 0
  %534 = vmatprep.subr.bf16.mxu0 0
  %535 = vmatpush2.bf16.msra.mxu0 0
  %536 = vmatprep.subr.bf16.mxu0 0
  %537 = vmatpush2.bf16.msra.mxu0 0
  %538 = vmatprep.mubr.bf16.mxu0 0
  %539 = vmatmul.mubr.bf16.gmra.mxu0 %v504
  %v540 = vpop.f32.mrf.mxu0
  %v541 = vadd.f32 0.0, %v540
  %v542 = vpop.f32.mrf.mxu0
  %v543 = vpop.f32.mrf.mxu0
  %v544 = vpop.f32.mrf.mxu0
  %545 = vdwg.mxu0
  %v546 = vadd.f32 %v500, %v541
  %v547 = vxor.u32 %v546, 2147483648
  %v548 = vmul.f32 %v547, 1.442695
  %v549 = vpow.pop %v548
  %v550 = vadd.f32 %v549, 1.0
  %v551 = vrcp.pop %v550
  %v552 = vmul.f32 1.0, %v551
  %v553 = vtanh.pop %v546
  %v554 = vmul.f32 %v552, %v485
  %556 = vrot.lane.b32.xlu0 %v553, 32
  %v557 = vpop.permute.xlu0 %556
  %v559 = vmul.f32 %v552, %v557
  %561 = vrot.lane.b32.xlu0 %v559, 32
  %v562 = vpop.permute.xlu0 %561
  %v564 = vadd.f32 %v554, %v562
  %v565 = vtanh.pop %v564
  %567 = vrot.lane.b32.xlu0 %v565, 32
  %v568 = vpop.permute.xlu0 %567
  %v570 = vmul.f32 %v552, %v568
  %v571 = vpack.c.bf16 %v570, %v570
  %v573 = vunpack.c.l.b16 %v571
  %v574 = vpack.c.b16 %v573, %v573
  %575 = vrot.lane.b32.xlu0 %v574, 64
  %v576 = vpop.permute.xlu0 %575
  %578 = vst.msk [vmem:[#allocation3 + $0x10] sm:$0xf] %vm261, %v576
  %v579 = vld [vmem:[#allocation2 + $0x28] sm:$0xff]
  %580 = vrot.lane.b32.xlu0 %v571, 64
  %v581 = vpop.permute.xlu0 %580
  %v583 = vsel %vm185, %v581, 0
  %585 = vmatprep.subr.bf16.mxu0 0
  %586 = vmatpush1.bf16.msra.mxu0 0
  %587 = vmatprep.subr.bf16.mxu0 0
  %588 = vmatpush1.bf16.msra.mxu0 0
  %589 = vmatprep.subr.bf16.mxu0 0
  %590 = vmatpush1.bf16.msra.mxu0 0
  %591 = vmatprep.subr.bf16.mxu0 0
  %592 = vmatpush1.bf16.msra.mxu0 0
  %593 = vmatprep.subr.bf16.mxu0 0
  %594 = vmatpush1.bf16.msra.mxu0 0
  %595 = vmatprep.subr.bf16.mxu0 0
  %596 = vmatpush1.bf16.msra.mxu0 0
  %597 = vmatprep.subr.bf16.mxu0 0
  %598 = vmatpush1.bf16.msra.mxu0 %v182
  %599 = vmatprep.subr.bf16.mxu0 0
  %600 = vmatpush1.bf16.msra.mxu0 %v181
  %601 = vmatprep.subr.bf16.mxu0 0
  %602 = vmatpush2.bf16.msra.mxu0 0
  %603 = vmatprep.subr.bf16.mxu0 0
  %604 = vmatpush2.bf16.msra.mxu0 0
  %605 = vmatprep.subr.bf16.mxu0 0
  %606 = vmatpush2.bf16.msra.mxu0 0
  %607 = vmatprep.subr.bf16.mxu0 0
  %608 = vmatpush2.bf16.msra.mxu0 0
  %609 = vmatprep.subr.bf16.mxu0 0
  %610 = vmatpush2.bf16.msra.mxu0 0
  %611 = vmatprep.subr.bf16.mxu0 0
  %612 = vmatpush2.bf16.msra.mxu0 0
  %613 = vmatprep.subr.bf16.mxu0 0
  %614 = vmatpush2.bf16.msra.mxu0 0
  %615 = vmatprep.subr.bf16.mxu0 0
  %616 = vmatpush2.bf16.msra.mxu0 0
  %617 = vmatprep.mubr.bf16.mxu0 0
  %618 = vmatmul.mubr.bf16.gmra.mxu0 %v583
  %v619 = vpop.f32.mrf.mxu0
  %v620 = vadd.f32 0.0, %v619
  %v621 = vpop.f32.mrf.mxu0
  %v622 = vpop.f32.mrf.mxu0
  %v623 = vpop.f32.mrf.mxu0
  %624 = vdwg.mxu0
  %v625 = vadd.f32 %v579, %v620
  %v626 = vxor.u32 %v625, 2147483648
  %v627 = vmul.f32 %v626, 1.442695
  %v628 = vpow.pop %v627
  %v629 = vadd.f32 %v628, 1.0
  %v630 = vrcp.pop %v629
  %v631 = vmul.f32 1.0, %v630
  %v632 = vtanh.pop %v625
  %v633 = vmul.f32 %v631, %v564
  %635 = vrot.lane.b32.xlu0 %v632, 32
  %v636 = vpop.permute.xlu0 %635
  %v638 = vmul.f32 %v631, %v636
  %640 = vrot.lane.b32.xlu0 %v638, 32
  %v641 = vpop.permute.xlu0 %640
  %v643 = vadd.f32 %v633, %v641
  %v644 = vtanh.pop %v643
  %646 = vrot.lane.b32.xlu0 %v644, 32
  %v647 = vpop.permute.xlu0 %646
  %v649 = vmul.f32 %v631, %v647
  %v650 = vpack.c.bf16 %v649, %v649
  %v652 = vunpack.c.l.b16 %v650
  %v653 = vpack.c.b16 %v652, %v652
  %654 = vrot.lane.b32.xlu0 %v653, 64
  %v655 = vpop.permute.xlu0 %654
  %657 = vst.msk [vmem:[#allocation3 + $0x14] sm:$0xf] %vm261, %v655
  %v658 = vld [vmem:[#allocation2 + $0x30] sm:$0xff]
  %659 = vrot.lane.b32.xlu0 %v650, 64
  %v660 = vpop.permute.xlu0 %659
  %v662 = vsel %vm185, %v660, 0
  %664 = vmatprep.subr.bf16.mxu0 0
  %665 = vmatpush1.bf16.msra.mxu0 0
  %666 = vmatprep.subr.bf16.mxu0 0
  %667 = vmatpush1.bf16.msra.mxu0 0
  %668 = vmatprep.subr.bf16.mxu0 0
  %669 = vmatpush1.bf16.msra.mxu0 0
  %670 = vmatprep.subr.bf16.mxu0 0
  %671 = vmatpush1.bf16.msra.mxu0 0
  %672 = vmatprep.subr.bf16.mxu0 0
  %673 = vmatpush1.bf16.msra.mxu0 0
  %674 = vmatprep.subr.bf16.mxu0 0
  %675 = vmatpush1.bf16.msra.mxu0 0
  %676 = vmatprep.subr.bf16.mxu0 0
  %677 = vmatpush1.bf16.msra.mxu0 %v182
  %678 = vmatprep.subr.bf16.mxu0 0
  %679 = vmatpush1.bf16.msra.mxu0 %v181
  %680 = vmatprep.subr.bf16.mxu0 0
  %681 = vmatpush2.bf16.msra.mxu0 0
  %682 = vmatprep.subr.bf16.mxu0 0
  %683 = vmatpush2.bf16.msra.mxu0 0
  %684 = vmatprep.subr.bf16.mxu0 0
  %685 = vmatpush2.bf16.msra.mxu0 0
  %686 = vmatprep.subr.bf16.mxu0 0
  %687 = vmatpush2.bf16.msra.mxu0 0
  %688 = vmatprep.subr.bf16.mxu0 0
  %689 = vmatpush2.bf16.msra.mxu0 0
  %690 = vmatprep.subr.bf16.mxu0 0
  %691 = vmatpush2.bf16.msra.mxu0 0
  %692 = vmatprep.subr.bf16.mxu0 0
  %693 = vmatpush2.bf16.msra.mxu0 0
  %694 = vmatprep.subr.bf16.mxu0 0
  %695 = vmatpush2.bf16.msra.mxu0 0
  %696 = vmatprep.mubr.bf16.mxu0 0
  %697 = vmatmul.mubr.bf16.gmra.mxu0 %v662
  %v698 = vpop.f32.mrf.mxu0
  %v699 = vadd.f32 0.0, %v698
  %v700 = vpop.f32.mrf.mxu0
  %v701 = vpop.f32.mrf.mxu0
  %v702 = vpop.f32.mrf.mxu0
  %703 = vdwg.mxu0
  %v704 = vadd.f32 %v658, %v699
  %v705 = vxor.u32 %v704, 2147483648
  %v706 = vmul.f32 %v705, 1.442695
  %v707 = vpow.pop %v706
  %v708 = vadd.f32 %v707, 1.0
  %v709 = vrcp.pop %v708
  %v710 = vmul.f32 1.0, %v709
  %v711 = vtanh.pop %v704
  %v712 = vmul.f32 %v710, %v643
  %714 = vrot.lane.b32.xlu0 %v711, 32
  %v715 = vpop.permute.xlu0 %714
  %v717 = vmul.f32 %v710, %v715
  %719 = vrot.lane.b32.xlu0 %v717, 32
  %v720 = vpop.permute.xlu0 %719
  %v722 = vadd.f32 %v712, %v720
  %v723 = vtanh.pop %v722
  %725 = vrot.lane.b32.xlu0 %v723, 32
  %v726 = vpop.permute.xlu0 %725
  %v728 = vmul.f32 %v710, %v726
  %v729 = vpack.c.bf16 %v728, %v728
  %v731 = vunpack.c.l.b16 %v729
  %v732 = vpack.c.b16 %v731, %v731
  %733 = vrot.lane.b32.xlu0 %v732, 64
  %v734 = vpop.permute.xlu0 %733
  %736 = vst.msk [vmem:[#allocation3 + $0x18] sm:$0xf] %vm261, %v734
  %v737 = vld [vmem:[#allocation2 + $0x38] sm:$0xff]
  %738 = vrot.lane.b32.xlu0 %v729, 64
  %v739 = vpop.permute.xlu0 %738
  %v741 = vsel %vm185, %v739, 0
  %743 = vmatprep.subr.bf16.mxu0 0
  %744 = vmatpush1.bf16.msra.mxu0 0
  %745 = vmatprep.subr.bf16.mxu0 0
  %746 = vmatpush1.bf16.msra.mxu0 0
  %747 = vmatprep.subr.bf16.mxu0 0
  %748 = vmatpush1.bf16.msra.mxu0 0
  %749 = vmatprep.subr.bf16.mxu0 0
  %750 = vmatpush1.bf16.msra.mxu0 0
  %751 = vmatprep.subr.bf16.mxu0 0
  %752 = vmatpush1.bf16.msra.mxu0 0
  %753 = vmatprep.subr.bf16.mxu0 0
  %754 = vmatpush1.bf16.msra.mxu0 0
  %755 = vmatprep.subr.bf16.mxu0 0
  %756 = vmatpush1.bf16.msra.mxu0 %v182
  %757 = vmatprep.subr.bf16.mxu0 0
  %758 = vmatpush1.bf16.msra.mxu0 %v181
  %759 = vmatprep.subr.bf16.mxu0 0
  %760 = vmatpush2.bf16.msra.mxu0 0
  %761 = vmatprep.subr.bf16.mxu0 0
  %762 = vmatpush2.bf16.msra.mxu0 0
  %763 = vmatprep.subr.bf16.mxu0 0
  %764 = vmatpush2.bf16.msra.mxu0 0
  %765 = vmatprep.subr.bf16.mxu0 0
  %766 = vmatpush2.bf16.msra.mxu0 0
  %767 = vmatprep.subr.bf16.mxu0 0
  %768 = vmatpush2.bf16.msra.mxu0 0
  %769 = vmatprep.subr.bf16.mxu0 0
  %770 = vmatpush2.bf16.msra.mxu0 0
  %771 = vmatprep.subr.bf16.mxu0 0
  %772 = vmatpush2.bf16.msra.mxu0 0
  %773 = vmatprep.subr.bf16.mxu0 0
  %774 = vmatpush2.bf16.msra.mxu0 0
  %775 = vmatprep.mubr.bf16.mxu0 0
  %776 = vmatmul.mubr.bf16.gmra.mxu0 %v741
  %v777 = vpop.f32.mrf.mxu0
  %v778 = vadd.f32 0.0, %v777
  %v779 = vpop.f32.mrf.mxu0
  %v780 = vpop.f32.mrf.mxu0
  %v781 = vpop.f32.mrf.mxu0
  %782 = vdwg.mxu0
  %v783 = vadd.f32 %v737, %v778
  %v784 = vxor.u32 %v783, 2147483648
  %v785 = vmul.f32 %v784, 1.442695
  %v786 = vpow.pop %v785
  %v787 = vadd.f32 %v786, 1.0
  %v788 = vrcp.pop %v787
  %v789 = vmul.f32 1.0, %v788
  %v790 = vtanh.pop %v783
  %v791 = vmul.f32 %v789, %v722
  %793 = vrot.lane.b32.xlu0 %v790, 32
  %v794 = vpop.permute.xlu0 %793
  %v796 = vmul.f32 %v789, %v794
  %798 = vrot.lane.b32.xlu0 %v796, 32
  %v799 = vpop.permute.xlu0 %798
  %v801 = vadd.f32 %v791, %v799
  %v802 = vtanh.pop %v801
  %804 = vrot.lane.b32.xlu0 %v802, 32
  %v805 = vpop.permute.xlu0 %804
  %v807 = vmul.f32 %v789, %v805
  %v808 = vpack.c.bf16 %v807, %v807
  %v810 = vunpack.c.l.b16 %v808
  %v811 = vpack.c.b16 %v810, %v810
  %812 = vrot.lane.b32.xlu0 %v811, 64
  %v813 = vpop.permute.xlu0 %812
  %815 = vst.msk [vmem:[#allocation3 + $0x1c] sm:$0xf] %vm261, %v813
  %v816 = vld [vmem:[#allocation3] sm:$0xf]
  %v817 = vld [vmem:[#allocation3 + $0x4] sm:$0xf]
  %v818 = vld [vmem:[#allocation3 + $0x8] sm:$0xf]
  %v819 = vld [vmem:[#allocation3 + $0xc] sm:$0xf]
  %v820 = vld [vmem:[#allocation3 + $0x10] sm:$0xf]
  %v821 = vld [vmem:[#allocation3 + $0x14] sm:$0xf]
  %v822 = vld [vmem:[#allocation3 + $0x18] sm:$0xf]
  %v823 = vld [vmem:[#allocation3 + $0x1c] sm:$0xf]
  %v824 = vld [vmem:[%s4] sm:$0xf]
  %v825 = vld [vmem:[%s4 + $0x4] sm:$0xf]
  %v826 = vld [vmem:[%s4 + $0x8] sm:$0xf]
  %v827 = vld [vmem:[%s4 + $0xc] sm:$0xf]
  %v828 = vld [vmem:[%s6] sm:$0x1]
  %v830 = vlaneseq
  %v831 = vshrl.u32 %v830, 7
  %v832 = vsub.s32 0, %v831
  %v833 = vrot.slane %v828, %v832
  %v843 = vunpack.c.l.b16 %v816
  %v844 = vunpack.c.l.b16 %v817
  %v845 = vunpack.c.l.b16 %v818
  %v846 = vunpack.c.l.b16 %v819
  %v847 = vunpack.c.l.b16 %v820
  %v848 = vunpack.c.l.b16 %v821
  %v849 = vunpack.c.l.b16 %v822
  %v850 = vunpack.c.l.b16 %v823
  %v851 = vpack.c.b16 %v844, %v843
  %v852 = vpack.c.b16 %v846, %v845
  %v853 = vpack.c.b16 %v848, %v847
  %v854 = vpack.c.b16 %v850, %v849
  %v859 = vunpack.c.l.b16 %v824
  %v860 = vunpack.c.l.b16 %v825
  %v861 = vunpack.c.l.b16 %v826
  %v862 = vunpack.c.l.b16 %v827
  %v863 = vpack.c.b16 %v860, %v859
  %v864 = vpack.c.b16 %v862, %v861
  %v868 = vsel %vm185, %v851, 0
  %v871 = vsel %vm185, %v852, 0
  %v874 = vsel %vm185, %v853, 0
  %v877 = vsel %vm185, %v854, 0
  %879 = vmatprep.subr.bf16.mxu0 0
  %880 = vmatpush1.bf16.msra.mxu0 0
  %881 = vmatprep.subr.bf16.mxu0 0
  %882 = vmatpush1.bf16.msra.mxu0 0
  %883 = vmatprep.subr.bf16.mxu0 0
  %884 = vmatpush1.bf16.msra.mxu0 0
  %885 = vmatprep.subr.bf16.mxu0 0
  %886 = vmatpush1.bf16.msra.mxu0 0
  %887 = vmatprep.subr.bf16.mxu0 0
  %888 = vmatpush1.bf16.msra.mxu0 0
  %889 = vmatprep.subr.bf16.mxu0 0
  %890 = vmatpush1.bf16.msra.mxu0 0
  %891 = vmatprep.subr.bf16.mxu0 0
  %892 = vmatpush1.bf16.msra.mxu0 %v864
  %893 = vmatprep.subr.bf16.mxu0 0
  %894 = vmatpush1.bf16.msra.mxu0 %v863
  %895 = vmatprep.subr.bf16.mxu0 0
  %896 = vmatpush2.bf16.msra.mxu0 0
  %897 = vmatprep.subr.bf16.mxu0 0
  %898 = vmatpush2.bf16.msra.mxu0 0
  %899 = vmatprep.subr.bf16.mxu0 0
  %900 = vmatpush2.bf16.msra.mxu0 0
  %901 = vmatprep.subr.bf16.mxu0 0
  %902 = vmatpush2.bf16.msra.mxu0 0
  %903 = vmatprep.subr.bf16.mxu0 0
  %904 = vmatpush2.bf16.msra.mxu0 0
  %905 = vmatprep.subr.bf16.mxu0 0
  %906 = vmatpush2.bf16.msra.mxu0 0
  %907 = vmatprep.subr.bf16.mxu0 0
  %908 = vmatpush2.bf16.msra.mxu0 0
  %909 = vmatprep.subr.bf16.mxu0 0
  %910 = vmatpush2.bf16.msra.mxu0 0
  %911 = vmatprep.mubr.bf16.mxu0 0
  %912 = vmatmul.mubr.bf16.gmra.mxu0 %v868
  %v913 = vpop.f32.mrf.mxu0
  %v914 = vadd.f32 %v833, %v913
  %v915 = vpop.f32.mrf.mxu0
  %v916 = vpop.f32.mrf.mxu0
  %v917 = vadd.f32 %v833, %v916
  %v918 = vpop.f32.mrf.mxu0
  %919 = vmatprep.mubr.bf16.mxu0 0
  %920 = vmatmul.mubr.bf16.gmra.mxu0 %v871
  %v921 = vpop.f32.mrf.mxu0
  %v922 = vadd.f32 %v833, %v921
  %v923 = vpop.f32.mrf.mxu0
  %v924 = vpop.f32.mrf.mxu0
  %v925 = vadd.f32 %v833, %v924
  %v926 = vpop.f32.mrf.mxu0
  %927 = vmatprep.mubr.bf16.mxu0 0
  %928 = vmatmul.mubr.bf16.gmra.mxu0 %v874
  %v929 = vpop.f32.mrf.mxu0
  %v930 = vadd.f32 %v833, %v929
  %v931 = vpop.f32.mrf.mxu0
  %v932 = vpop.f32.mrf.mxu0
  %v933 = vadd.f32 %v833, %v932
  %v934 = vpop.f32.mrf.mxu0
  %935 = vmatprep.mubr.bf16.mxu0 0
  %936 = vmatmul.mubr.bf16.gmra.mxu0 %v877
  %v937 = vpop.f32.mrf.mxu0
  %v938 = vadd.f32 %v833, %v937
  %v939 = vpop.f32.mrf.mxu0
  %v940 = vpop.f32.mrf.mxu0
  %v941 = vadd.f32 %v833, %v940
  %v942 = vpop.f32.mrf.mxu0
  %943 = vdwg.mxu0
  %944 = vst [vmem:[#allocation2] sm:$0xff] %v914
  %945 = vst [vmem:[#allocation2 + $0x8] sm:$0xff] %v917
  %946 = vst [vmem:[#allocation2 + $0x10] sm:$0xff] %v922
  %947 = vst [vmem:[#allocation2 + $0x18] sm:$0xff] %v925
  %948 = vst [vmem:[#allocation2 + $0x20] sm:$0xff] %v930
  %949 = vst [vmem:[#allocation2 + $0x28] sm:$0xff] %v933
  %950 = vst [vmem:[#allocation2 + $0x30] sm:$0xff] %v938
  %951 = vst [vmem:[#allocation2 + $0x38] sm:$0xff] %v941
  %v952 = vld [vmem:[%s5] sm:$0xf]
  %v953 = vld [vmem:[%s5 + $0x4] sm:$0xf]
  %v954 = vld [vmem:[%s5 + $0x8] sm:$0xf]
  %v955 = vld [vmem:[%s5 + $0xc] sm:$0xf]
  %v956 = vld [vmem:[#allocation2] sm:$0xff]
  %v961 = vunpack.c.l.b16 %v952
  %v962 = vunpack.c.l.b16 %v953
  %v963 = vunpack.c.l.b16 %v954
  %v964 = vunpack.c.l.b16 %v955
  %v965 = vpack.c.b16 %v962, %v961
  %v966 = vpack.c.b16 %v964, %v963
  %969 = vmatprep.subr.bf16.mxu0 0
  %970 = vmatpush1.bf16.msra.mxu0 0
  %971 = vmatprep.subr.bf16.mxu0 0
  %972 = vmatpush1.bf16.msra.mxu0 0
  %973 = vmatprep.subr.bf16.mxu0 0
  %974 = vmatpush1.bf16.msra.mxu0 0
  %975 = vmatprep.subr.bf16.mxu0 0
  %976 = vmatpush1.bf16.msra.mxu0 0
  %977 = vmatprep.subr.bf16.mxu0 0
  %978 = vmatpush1.bf16.msra.mxu0 0
  %979 = vmatprep.subr.bf16.mxu0 0
  %980 = vmatpush1.bf16.msra.mxu0 0
  %981 = vmatprep.subr.bf16.mxu0 0
  %982 = vmatpush1.bf16.msra.mxu0 %v966
  %983 = vmatprep.subr.bf16.mxu0 0
  %984 = vmatpush1.bf16.msra.mxu0 %v965
  %985 = vmatprep.subr.bf16.mxu0 0
  %986 = vmatpush2.bf16.msra.mxu0 0
  %987 = vmatprep.subr.bf16.mxu0 0
  %988 = vmatpush2.bf16.msra.mxu0 0
  %989 = vmatprep.subr.bf16.mxu0 0
  %990 = vmatpush2.bf16.msra.mxu0 0
  %991 = vmatprep.subr.bf16.mxu0 0
  %992 = vmatpush2.bf16.msra.mxu0 0
  %993 = vmatprep.subr.bf16.mxu0 0
  %994 = vmatpush2.bf16.msra.mxu0 0
  %995 = vmatprep.subr.bf16.mxu0 0
  %996 = vmatpush2.bf16.msra.mxu0 0
  %997 = vmatprep.subr.bf16.mxu0 0
  %998 = vmatpush2.bf16.msra.mxu0 0
  %999 = vmatprep.subr.bf16.mxu0 0
  %1000 = vmatpush2.bf16.msra.mxu0 0
  %1001 = vmatprep.mubr.bf16.mxu0 0
  %1002 = vmatmul.mubr.bf16.gmra.mxu0 %v187
  %v1003 = vpop.f32.mrf.mxu0
  %v1004 = vadd.f32 0.0, %v1003
  %v1005 = vpop.f32.mrf.mxu0
  %v1006 = vpop.f32.mrf.mxu0
  %v1007 = vpop.f32.mrf.mxu0
  %1008 = vdwg.mxu0
  %v1009 = vadd.f32 %v956, %v1004
  %v1010 = vxor.u32 %v1009, 2147483648
  %v1011 = vmul.f32 %v1010, 1.442695
  %v1012 = vpow.pop %v1011
  %v1013 = vadd.f32 %v1012, 1.0
  %v1014 = vrcp.pop %v1013
  %v1015 = vmul.f32 1.0, %v1014
  %v1016 = vtanh.pop %v1009
  %v1017 = vmul.f32 %v1015, 0.0
  %1019 = vrot.lane.b32.xlu0 %v1016, 32
  %v1020 = vpop.permute.xlu0 %1019
  %v1022 = vmul.f32 %v1015, %v1020
  %1024 = vrot.lane.b32.xlu0 %v1022, 32
  %v1025 = vpop.permute.xlu0 %1024
  %v1027 = vadd.f32 %v1017, %v1025
  %v1028 = vtanh.pop %v1027
  %1030 = vrot.lane.b32.xlu0 %v1028, 32
  %v1031 = vpop.permute.xlu0 %1030
  %v1033 = vmul.f32 %v1015, %v1031
  %v1034 = vld [vmem:[#allocation2 + $0x8] sm:$0xff]
  %v1035 = vpack.c.bf16 %v1033, %v1033
  %1037 = vrot.lane.b32.xlu0 %v1035, 64
  %v1038 = vpop.permute.xlu0 %1037
  %v1040 = vsel %vm185, %v1038, 0
  %1042 = vmatprep.subr.bf16.mxu0 0
  %1043 = vmatpush1.bf16.msra.mxu0 0
  %1044 = vmatprep.subr.bf16.mxu0 0
  %1045 = vmatpush1.bf16.msra.mxu0 0
  %1046 = vmatprep.subr.bf16.mxu0 0
  %1047 = vmatpush1.bf16.msra.mxu0 0
  %1048 = vmatprep.subr.bf16.mxu0 0
  %1049 = vmatpush1.bf16.msra.mxu0 0
  %1050 = vmatprep.subr.bf16.mxu0 0
  %1051 = vmatpush1.bf16.msra.mxu0 0
  %1052 = vmatprep.subr.bf16.mxu0 0
  %1053 = vmatpush1.bf16.msra.mxu0 0
  %1054 = vmatprep.subr.bf16.mxu0 0
  %1055 = vmatpush1.bf16.msra.mxu0 %v966
  %1056 = vmatprep.subr.bf16.mxu0 0
  %1057 = vmatpush1.bf16.msra.mxu0 %v965
  %1058 = vmatprep.subr.bf16.mxu0 0
  %1059 = vmatpush2.bf16.msra.mxu0 0
  %1060 = vmatprep.subr.bf16.mxu0 0
  %1061 = vmatpush2.bf16.msra.mxu0 0
  %1062 = vmatprep.subr.bf16.mxu0 0
  %1063 = vmatpush2.bf16.msra.mxu0 0
  %1064 = vmatprep.subr.bf16.mxu0 0
  %1065 = vmatpush2.bf16.msra.mxu0 0
  %1066 = vmatprep.subr.bf16.mxu0 0
  %1067 = vmatpush2.bf16.msra.mxu0 0
  %1068 = vmatprep.subr.bf16.mxu0 0
  %1069 = vmatpush2.bf16.msra.mxu0 0
  %1070 = vmatprep.subr.bf16.mxu0 0
  %1071 = vmatpush2.bf16.msra.mxu0 0
  %1072 = vmatprep.subr.bf16.mxu0 0
  %1073 = vmatpush2.bf16.msra.mxu0 0
  %1074 = vmatprep.mubr.bf16.mxu0 0
  %1075 = vmatmul.mubr.bf16.gmra.mxu0 %v1040
  %v1076 = vpop.f32.mrf.mxu0
  %v1077 = vadd.f32 0.0, %v1076
  %v1078 = vpop.f32.mrf.mxu0
  %v1079 = vpop.f32.mrf.mxu0
  %v1080 = vpop.f32.mrf.mxu0
  %1081 = vdwg.mxu0
  %v1082 = vadd.f32 %v1034, %v1077
  %v1083 = vxor.u32 %v1082, 2147483648
  %v1084 = vmul.f32 %v1083, 1.442695
  %v1085 = vpow.pop %v1084
  %v1086 = vadd.f32 %v1085, 1.0
  %v1087 = vrcp.pop %v1086
  %v1088 = vmul.f32 1.0, %v1087
  %v1089 = vtanh.pop %v1082
  %v1090 = vmul.f32 %v1088, %v1027
  %1092 = vrot.lane.b32.xlu0 %v1089, 32
  %v1093 = vpop.permute.xlu0 %1092
  %v1095 = vmul.f32 %v1088, %v1093
  %1097 = vrot.lane.b32.xlu0 %v1095, 32
  %v1098 = vpop.permute.xlu0 %1097
  %v1100 = vadd.f32 %v1090, %v1098
  %v1101 = vtanh.pop %v1100
  %1103 = vrot.lane.b32.xlu0 %v1101, 32
  %v1104 = vpop.permute.xlu0 %1103
  %v1106 = vmul.f32 %v1088, %v1104
  %v1107 = vld [vmem:[#allocation2 + $0x10] sm:$0xff]
  %v1108 = vpack.c.bf16 %v1106, %v1106
  %1110 = vrot.lane.b32.xlu0 %v1108, 64
  %v1111 = vpop.permute.xlu0 %1110
  %v1113 = vsel %vm185, %v1111, 0
  %1115 = vmatprep.subr.bf16.mxu0 0
  %1116 = vmatpush1.bf16.msra.mxu0 0
  %1117 = vmatprep.subr.bf16.mxu0 0
  %1118 = vmatpush1.bf16.msra.mxu0 0
  %1119 = vmatprep.subr.bf16.mxu0 0
  %1120 = vmatpush1.bf16.msra.mxu0 0
  %1121 = vmatprep.subr.bf16.mxu0 0
  %1122 = vmatpush1.bf16.msra.mxu0 0
  %1123 = vmatprep.subr.bf16.mxu0 0
  %1124 = vmatpush1.bf16.msra.mxu0 0
  %1125 = vmatprep.subr.bf16.mxu0 0
  %1126 = vmatpush1.bf16.msra.mxu0 0
  %1127 = vmatprep.subr.bf16.mxu0 0
  %1128 = vmatpush1.bf16.msra.mxu0 %v966
  %1129 = vmatprep.subr.bf16.mxu0 0
  %1130 = vmatpush1.bf16.msra.mxu0 %v965
  %1131 = vmatprep.subr.bf16.mxu0 0
  %1132 = vmatpush2.bf16.msra.mxu0 0
  %1133 = vmatprep.subr.bf16.mxu0 0
  %1134 = vmatpush2.bf16.msra.mxu0 0
  %1135 = vmatprep.subr.bf16.mxu0 0
  %1136 = vmatpush2.bf16.msra.mxu0 0
  %1137 = vmatprep.subr.bf16.mxu0 0
  %1138 = vmatpush2.bf16.msra.mxu0 0
  %1139 = vmatprep.subr.bf16.mxu0 0
  %1140 = vmatpush2.bf16.msra.mxu0 0
  %1141 = vmatprep.subr.bf16.mxu0 0
  %1142 = vmatpush2.bf16.msra.mxu0 0
  %1143 = vmatprep.subr.bf16.mxu0 0
  %1144 = vmatpush2.bf16.msra.mxu0 0
  %1145 = vmatprep.subr.bf16.mxu0 0
  %1146 = vmatpush2.bf16.msra.mxu0 0
  %1147 = vmatprep.mubr.bf16.mxu0 0
  %1148 = vmatmul.mubr.bf16.gmra.mxu0 %v1113
  %v1149 = vpop.f32.mrf.mxu0
  %v1150 = vadd.f32 0.0, %v1149
  %v1151 = vpop.f32.mrf.mxu0
  %v1152 = vpop.f32.mrf.mxu0
  %v1153 = vpop.f32.mrf.mxu0
  %1154 = vdwg.mxu0
  %v1155 = vadd.f32 %v1107, %v1150
  %v1156 = vxor.u32 %v1155, 2147483648
  %v1157 = vmul.f32 %v1156, 1.442695
  %v1158 = vpow.pop %v1157
  %v1159 = vadd.f32 %v1158, 1.0
  %v1160 = vrcp.pop %v1159
  %v1161 = vmul.f32 1.0, %v1160
  %v1162 = vtanh.pop %v1155
  %v1163 = vmul.f32 %v1161, %v1100
  %1165 = vrot.lane.b32.xlu0 %v1162, 32
  %v1166 = vpop.permute.xlu0 %1165
  %v1168 = vmul.f32 %v1161, %v1166
  %1170 = vrot.lane.b32.xlu0 %v1168, 32
  %v1171 = vpop.permute.xlu0 %1170
  %v1173 = vadd.f32 %v1163, %v1171
  %v1174 = vtanh.pop %v1173
  %1176 = vrot.lane.b32.xlu0 %v1174, 32
  %v1177 = vpop.permute.xlu0 %1176
  %v1179 = vmul.f32 %v1161, %v1177
  %v1180 = vld [vmem:[#allocation2 + $0x18] sm:$0xff]
  %v1181 = vpack.c.bf16 %v1179, %v1179
  %1183 = vrot.lane.b32.xlu0 %v1181, 64
  %v1184 = vpop.permute.xlu0 %1183
  %v1186 = vsel %vm185, %v1184, 0
  %1188 = vmatprep.subr.bf16.mxu0 0
  %1189 = vmatpush1.bf16.msra.mxu0 0
  %1190 = vmatprep.subr.bf16.mxu0 0
  %1191 = vmatpush1.bf16.msra.mxu0 0
  %1192 = vmatprep.subr.bf16.mxu0 0
  %1193 = vmatpush1.bf16.msra.mxu0 0
  %1194 = vmatprep.subr.bf16.mxu0 0
  %1195 = vmatpush1.bf16.msra.mxu0 0
  %1196 = vmatprep.subr.bf16.mxu0 0
  %1197 = vmatpush1.bf16.msra.mxu0 0
  %1198 = vmatprep.subr.bf16.mxu0 0
  %1199 = vmatpush1.bf16.msra.mxu0 0
  %1200 = vmatprep.subr.bf16.mxu0 0
  %1201 = vmatpush1.bf16.msra.mxu0 %v966
  %1202 = vmatprep.subr.bf16.mxu0 0
  %1203 = vmatpush1.bf16.msra.mxu0 %v965
  %1204 = vmatprep.subr.bf16.mxu0 0
  %1205 = vmatpush2.bf16.msra.mxu0 0
  %1206 = vmatprep.subr.bf16.mxu0 0
  %1207 = vmatpush2.bf16.msra.mxu0 0
  %1208 = vmatprep.subr.bf16.mxu0 0
  %1209 = vmatpush2.bf16.msra.mxu0 0
  %1210 = vmatprep.subr.bf16.mxu0 0
  %1211 = vmatpush2.bf16.msra.mxu0 0
  %1212 = vmatprep.subr.bf16.mxu0 0
  %1213 = vmatpush2.bf16.msra.mxu0 0
  %1214 = vmatprep.subr.bf16.mxu0 0
  %1215 = vmatpush2.bf16.msra.mxu0 0
  %1216 = vmatprep.subr.bf16.mxu0 0
  %1217 = vmatpush2.bf16.msra.mxu0 0
  %1218 = vmatprep.subr.bf16.mxu0 0
  %1219 = vmatpush2.bf16.msra.mxu0 0
  %1220 = vmatprep.mubr.bf16.mxu0 0
  %1221 = vmatmul.mubr.bf16.gmra.mxu0 %v1186
  %v1222 = vpop.f32.mrf.mxu0
  %v1223 = vadd.f32 0.0, %v1222
  %v1224 = vpop.f32.mrf.mxu0
  %v1225 = vpop.f32.mrf.mxu0
  %v1226 = vpop.f32.mrf.mxu0
  %1227 = vdwg.mxu0
  %v1228 = vadd.f32 %v1180, %v1223
  %v1229 = vxor.u32 %v1228, 2147483648
  %v1230 = vmul.f32 %v1229, 1.442695
  %v1231 = vpow.pop %v1230
  %v1232 = vadd.f32 %v1231, 1.0
  %v1233 = vrcp.pop %v1232
  %v1234 = vmul.f32 1.0, %v1233
  %v1235 = vtanh.pop %v1228
  %v1236 = vmul.f32 %v1234, %v1173
  %1238 = vrot.lane.b32.xlu0 %v1235, 32
  %v1239 = vpop.permute.xlu0 %1238
  %v1241 = vmul.f32 %v1234, %v1239
  %1243 = vrot.lane.b32.xlu0 %v1241, 32
  %v1244 = vpop.permute.xlu0 %1243
  %v1246 = vadd.f32 %v1236, %v1244
  %v1247 = vtanh.pop %v1246
  %1249 = vrot.lane.b32.xlu0 %v1247, 32
  %v1250 = vpop.permute.xlu0 %1249
  %v1252 = vmul.f32 %v1234, %v1250
  %v1253 = vld [vmem:[#allocation2 + $0x20] sm:$0xff]
  %v1254 = vpack.c.bf16 %v1252, %v1252
  %1256 = vrot.lane.b32.xlu0 %v1254, 64
  %v1257 = vpop.permute.xlu0 %1256
  %v1259 = vsel %vm185, %v1257, 0
  %1261 = vmatprep.subr.bf16.mxu0 0
  %1262 = vmatpush1.bf16.msra.mxu0 0
  %1263 = vmatprep.subr.bf16.mxu0 0
  %1264 = vmatpush1.bf16.msra.mxu0 0
  %1265 = vmatprep.subr.bf16.mxu0 0
  %1266 = vmatpush1.bf16.msra.mxu0 0
  %1267 = vmatprep.subr.bf16.mxu0 0
  %1268 = vmatpush1.bf16.msra.mxu0 0
  %1269 = vmatprep.subr.bf16.mxu0 0
  %1270 = vmatpush1.bf16.msra.mxu0 0
  %1271 = vmatprep.subr.bf16.mxu0 0
  %1272 = vmatpush1.bf16.msra.mxu0 0
  %1273 = vmatprep.subr.bf16.mxu0 0
  %1274 = vmatpush1.bf16.msra.mxu0 %v966
  %1275 = vmatprep.subr.bf16.mxu0 0
  %1276 = vmatpush1.bf16.msra.mxu0 %v965
  %1277 = vmatprep.subr.bf16.mxu0 0
  %1278 = vmatpush2.bf16.msra.mxu0 0
  %1279 = vmatprep.subr.bf16.mxu0 0
  %1280 = vmatpush2.bf16.msra.mxu0 0
  %1281 = vmatprep.subr.bf16.mxu0 0
  %1282 = vmatpush2.bf16.msra.mxu0 0
  %1283 = vmatprep.subr.bf16.mxu0 0
  %1284 = vmatpush2.bf16.msra.mxu0 0
  %1285 = vmatprep.subr.bf16.mxu0 0
  %1286 = vmatpush2.bf16.msra.mxu0 0
  %1287 = vmatprep.subr.bf16.mxu0 0
  %1288 = vmatpush2.bf16.msra.mxu0 0
  %1289 = vmatprep.subr.bf16.mxu0 0
  %1290 = vmatpush2.bf16.msra.mxu0 0
  %1291 = vmatprep.subr.bf16.mxu0 0
  %1292 = vmatpush2.bf16.msra.mxu0 0
  %1293 = vmatprep.mubr.bf16.mxu0 0
  %1294 = vmatmul.mubr.bf16.gmra.mxu0 %v1259
  %v1295 = vpop.f32.mrf.mxu0
  %v1296 = vadd.f32 0.0, %v1295
  %v1297 = vpop.f32.mrf.mxu0
  %v1298 = vpop.f32.mrf.mxu0
  %v1299 = vpop.f32.mrf.mxu0
  %1300 = vdwg.mxu0
  %v1301 = vadd.f32 %v1253, %v1296
  %v1302 = vxor.u32 %v1301, 2147483648
  %v1303 = vmul.f32 %v1302, 1.442695
  %v1304 = vpow.pop %v1303
  %v1305 = vadd.f32 %v1304, 1.0
  %v1306 = vrcp.pop %v1305
  %v1307 = vmul.f32 1.0, %v1306
  %v1308 = vtanh.pop %v1301
  %v1309 = vmul.f32 %v1307, %v1246
  %1311 = vrot.lane.b32.xlu0 %v1308, 32
  %v1312 = vpop.permute.xlu0 %1311
  %v1314 = vmul.f32 %v1307, %v1312
  %1316 = vrot.lane.b32.xlu0 %v1314, 32
  %v1317 = vpop.permute.xlu0 %1316
  %v1319 = vadd.f32 %v1309, %v1317
  %v1320 = vtanh.pop %v1319
  %1322 = vrot.lane.b32.xlu0 %v1320, 32
  %v1323 = vpop.permute.xlu0 %1322
  %v1325 = vmul.f32 %v1307, %v1323
  %v1326 = vld [vmem:[#allocation2 + $0x28] sm:$0xff]
  %v1327 = vpack.c.bf16 %v1325, %v1325
  %1329 = vrot.lane.b32.xlu0 %v1327, 64
  %v1330 = vpop.permute.xlu0 %1329
  %v1332 = vsel %vm185, %v1330, 0
  %1334 = vmatprep.subr.bf16.mxu0 0
  %1335 = vmatpush1.bf16.msra.mxu0 0
  %1336 = vmatprep.subr.bf16.mxu0 0
  %1337 = vmatpush1.bf16.msra.mxu0 0
  %1338 = vmatprep.subr.bf16.mxu0 0
  %1339 = vmatpush1.bf16.msra.mxu0 0
  %1340 = vmatprep.subr.bf16.mxu0 0
  %1341 = vmatpush1.bf16.msra.mxu0 0
  %1342 = vmatprep.subr.bf16.mxu0 0
  %1343 = vmatpush1.bf16.msra.mxu0 0
  %1344 = vmatprep.subr.bf16.mxu0 0
  %1345 = vmatpush1.bf16.msra.mxu0 0
  %1346 = vmatprep.subr.bf16.mxu0 0
  %1347 = vmatpush1.bf16.msra.mxu0 %v966
  %1348 = vmatprep.subr.bf16.mxu0 0
  %1349 = vmatpush1.bf16.msra.mxu0 %v965
  %1350 = vmatprep.subr.bf16.mxu0 0
  %1351 = vmatpush2.bf16.msra.mxu0 0
  %1352 = vmatprep.subr.bf16.mxu0 0
  %1353 = vmatpush2.bf16.msra.mxu0 0
  %1354 = vmatprep.subr.bf16.mxu0 0
  %1355 = vmatpush2.bf16.msra.mxu0 0
  %1356 = vmatprep.subr.bf16.mxu0 0
  %1357 = vmatpush2.bf16.msra.mxu0 0
  %1358 = vmatprep.subr.bf16.mxu0 0
  %1359 = vmatpush2.bf16.msra.mxu0 0
  %1360 = vmatprep.subr.bf16.mxu0 0
  %1361 = vmatpush2.bf16.msra.mxu0 0
  %1362 = vmatprep.subr.bf16.mxu0 0
  %1363 = vmatpush2.bf16.msra.mxu0 0
  %1364 = vmatprep.subr.bf16.mxu0 0
  %1365 = vmatpush2.bf16.msra.mxu0 0
  %1366 = vmatprep.mubr.bf16.mxu0 0
  %1367 = vmatmul.mubr.bf16.gmra.mxu0 %v1332
  %v1368 = vpop.f32.mrf.mxu0
  %v1369 = vadd.f32 0.0, %v1368
  %v1370 = vpop.f32.mrf.mxu0
  %v1371 = vpop.f32.mrf.mxu0
  %v1372 = vpop.f32.mrf.mxu0
  %1373 = vdwg.mxu0
  %v1374 = vadd.f32 %v1326, %v1369
  %v1375 = vxor.u32 %v1374, 2147483648
  %v1376 = vmul.f32 %v1375, 1.442695
  %v1377 = vpow.pop %v1376
  %v1378 = vadd.f32 %v1377, 1.0
  %v1379 = vrcp.pop %v1378
  %v1380 = vmul.f32 1.0, %v1379
  %v1381 = vtanh.pop %v1374
  %v1382 = vmul.f32 %v1380, %v1319
  %1384 = vrot.lane.b32.xlu0 %v1381, 32
  %v1385 = vpop.permute.xlu0 %1384
  %v1387 = vmul.f32 %v1380, %v1385
  %1389 = vrot.lane.b32.xlu0 %v1387, 32
  %v1390 = vpop.permute.xlu0 %1389
  %v1392 = vadd.f32 %v1382, %v1390
  %v1393 = vtanh.pop %v1392
  %1395 = vrot.lane.b32.xlu0 %v1393, 32
  %v1396 = vpop.permute.xlu0 %1395
  %v1398 = vmul.f32 %v1380, %v1396
  %v1399 = vld [vmem:[#allocation2 + $0x30] sm:$0xff]
  %v1400 = vpack.c.bf16 %v1398, %v1398
  %1402 = vrot.lane.b32.xlu0 %v1400, 64
  %v1403 = vpop.permute.xlu0 %1402
  %v1405 = vsel %vm185, %v1403, 0
  %1407 = vmatprep.subr.bf16.mxu0 0
  %1408 = vmatpush1.bf16.msra.mxu0 0
  %1409 = vmatprep.subr.bf16.mxu0 0
  %1410 = vmatpush1.bf16.msra.mxu0 0
  %1411 = vmatprep.subr.bf16.mxu0 0
  %1412 = vmatpush1.bf16.msra.mxu0 0
  %1413 = vmatprep.subr.bf16.mxu0 0
  %1414 = vmatpush1.bf16.msra.mxu0 0
  %1415 = vmatprep.subr.bf16.mxu0 0
  %1416 = vmatpush1.bf16.msra.mxu0 0
  %1417 = vmatprep.subr.bf16.mxu0 0
  %1418 = vmatpush1.bf16.msra.mxu0 0
  %1419 = vmatprep.subr.bf16.mxu0 0
  %1420 = vmatpush1.bf16.msra.mxu0 %v966
  %1421 = vmatprep.subr.bf16.mxu0 0
  %1422 = vmatpush1.bf16.msra.mxu0 %v965
  %1423 = vmatprep.subr.bf16.mxu0 0
  %1424 = vmatpush2.bf16.msra.mxu0 0
  %1425 = vmatprep.subr.bf16.mxu0 0
  %1426 = vmatpush2.bf16.msra.mxu0 0
  %1427 = vmatprep.subr.bf16.mxu0 0
  %1428 = vmatpush2.bf16.msra.mxu0 0
  %1429 = vmatprep.subr.bf16.mxu0 0
  %1430 = vmatpush2.bf16.msra.mxu0 0
  %1431 = vmatprep.subr.bf16.mxu0 0
  %1432 = vmatpush2.bf16.msra.mxu0 0
  %1433 = vmatprep.subr.bf16.mxu0 0
  %1434 = vmatpush2.bf16.msra.mxu0 0
  %1435 = vmatprep.subr.bf16.mxu0 0
  %1436 = vmatpush2.bf16.msra.mxu0 0
  %1437 = vmatprep.subr.bf16.mxu0 0
  %1438 = vmatpush2.bf16.msra.mxu0 0
  %1439 = vmatprep.mubr.bf16.mxu0 0
  %1440 = vmatmul.mubr.bf16.gmra.mxu0 %v1405
  %v1441 = vpop.f32.mrf.mxu0
  %v1442 = vadd.f32 0.0, %v1441
  %v1443 = vpop.f32.mrf.mxu0
  %v1444 = vpop.f32.mrf.mxu0
  %v1445 = vpop.f32.mrf.mxu0
  %1446 = vdwg.mxu0
  %v1447 = vadd.f32 %v1399, %v1442
  %v1448 = vxor.u32 %v1447, 2147483648
  %v1449 = vmul.f32 %v1448, 1.442695
  %v1450 = vpow.pop %v1449
  %v1451 = vadd.f32 %v1450, 1.0
  %v1452 = vrcp.pop %v1451
  %v1453 = vmul.f32 1.0, %v1452
  %v1454 = vtanh.pop %v1447
  %v1455 = vmul.f32 %v1453, %v1392
  %1457 = vrot.lane.b32.xlu0 %v1454, 32
  %v1458 = vpop.permute.xlu0 %1457
  %v1460 = vmul.f32 %v1453, %v1458
  %1462 = vrot.lane.b32.xlu0 %v1460, 32
  %v1463 = vpop.permute.xlu0 %1462
  %v1465 = vadd.f32 %v1455, %v1463
  %v1466 = vtanh.pop %v1465
  %1468 = vrot.lane.b32.xlu0 %v1466, 32
  %v1469 = vpop.permute.xlu0 %1468
  %v1471 = vmul.f32 %v1453, %v1469
  %v1472 = vld [vmem:[#allocation2 + $0x38] sm:$0xff]
  %v1473 = vpack.c.bf16 %v1471, %v1471
  %1475 = vrot.lane.b32.xlu0 %v1473, 64
  %v1476 = vpop.permute.xlu0 %1475
  %v1478 = vsel %vm185, %v1476, 0
  %1480 = vmatprep.subr.bf16.mxu0 0
  %1481 = vmatpush1.bf16.msra.mxu0 0
  %1482 = vmatprep.subr.bf16.mxu0 0
  %1483 = vmatpush1.bf16.msra.mxu0 0
  %1484 = vmatprep.subr.bf16.mxu0 0
  %1485 = vmatpush1.bf16.msra.mxu0 0
  %1486 = vmatprep.subr.bf16.mxu0 0
  %1487 = vmatpush1.bf16.msra.mxu0 0
  %1488 = vmatprep.subr.bf16.mxu0 0
  %1489 = vmatpush1.bf16.msra.mxu0 0
  %1490 = vmatprep.subr.bf16.mxu0 0
  %1491 = vmatpush1.bf16.msra.mxu0 0
  %1492 = vmatprep.subr.bf16.mxu0 0
  %1493 = vmatpush1.bf16.msra.mxu0 %v966
  %1494 = vmatprep.subr.bf16.mxu0 0
  %1495 = vmatpush1.bf16.msra.mxu0 %v965
  %1496 = vmatprep.subr.bf16.mxu0 0
  %1497 = vmatpush2.bf16.msra.mxu0 0
  %1498 = vmatprep.subr.bf16.mxu0 0
  %1499 = vmatpush2.bf16.msra.mxu0 0
  %1500 = vmatprep.subr.bf16.mxu0 0
  %1501 = vmatpush2.bf16.msra.mxu0 0
  %1502 = vmatprep.subr.bf16.mxu0 0
  %1503 = vmatpush2.bf16.msra.mxu0 0
  %1504 = vmatprep.subr.bf16.mxu0 0
  %1505 = vmatpush2.bf16.msra.mxu0 0
  %1506 = vmatprep.subr.bf16.mxu0 0
  %1507 = vmatpush2.bf16.msra.mxu0 0
  %1508 = vmatprep.subr.bf16.mxu0 0
  %1509 = vmatpush2.bf16.msra.mxu0 0
  %1510 = vmatprep.subr.bf16.mxu0 0
  %1511 = vmatpush2.bf16.msra.mxu0 0
  %1512 = vmatprep.mubr.bf16.mxu0 0
  %1513 = vmatmul.mubr.bf16.gmra.mxu0 %v1478
  %v1514 = vpop.f32.mrf.mxu0
  %v1515 = vadd.f32 0.0, %v1514
  %v1516 = vpop.f32.mrf.mxu0
  %v1517 = vpop.f32.mrf.mxu0
  %v1518 = vpop.f32.mrf.mxu0
  %1519 = vdwg.mxu0
  %v1520 = vadd.f32 %v1472, %v1515
  %v1521 = vxor.u32 %v1520, 2147483648
  %v1522 = vmul.f32 %v1521, 1.442695
  %v1523 = vpow.pop %v1522
  %v1524 = vadd.f32 %v1523, 1.0
  %v1525 = vrcp.pop %v1524
  %v1526 = vmul.f32 1.0, %v1525
  %v1527 = vtanh.pop %v1520
  %v1528 = vmul.f32 %v1526, %v1465
  %1530 = vrot.lane.b32.xlu0 %v1527, 32
  %v1531 = vpop.permute.xlu0 %1530
  %v1533 = vmul.f32 %v1526, %v1531
  %1535 = vrot.lane.b32.xlu0 %v1533, 32
  %v1536 = vpop.permute.xlu0 %1535
  %v1538 = vadd.f32 %v1528, %v1536
  %v1539 = vtanh.pop %v1538
  %1541 = vrot.lane.b32.xlu0 %v1539, 32
  %v1542 = vpop.permute.xlu0 %1541
  %v1544 = vmul.f32 %v1526, %v1542
  %v1545 = vmax.f32 %v1544, 0.0
  %v1546 = vpack.c.bf16 %v1545, %v1545
  %v1547 = vld [vmem:[%s7] sm:$0xf]
  %v1548 = vld [vmem:[%s7 + $0x4] sm:$0xf]
  %v1549 = vld [vmem:[%s7 + $0x8] sm:$0xf]
  %v1550 = vld [vmem:[%s7 + $0xc] sm:$0xf]
  %v1551 = vld [vmem:[%s8] sm:$0x1]
  %v1553 = vlaneseq
  %v1554 = vshrl.u32 %v1553, 7
  %v1555 = vsub.s32 0, %v1554
  %v1556 = vrot.slane %v1551, %v1555
  %1559 = vrot.lane.b32.xlu0 %v1546, 64
  %v1560 = vpop.permute.xlu0 %1559
  %v1565 = vunpack.c.l.b16 %v1547
  %v1566 = vunpack.c.l.b16 %v1548
  %v1567 = vunpack.c.l.b16 %v1549
  %v1568 = vunpack.c.l.b16 %v1550
  %v1569 = vpack.c.b16 %v1566, %v1565
  %v1570 = vpack.c.b16 %v1568, %v1567
  %v1574 = vsel %vm185, %v1560, 0
  %1576 = vmatprep.subr.bf16.mxu0 0
  %1577 = vmatpush1.bf16.msra.mxu0 0
  %1578 = vmatprep.subr.bf16.mxu0 0
  %1579 = vmatpush1.bf16.msra.mxu0 0
  %1580 = vmatprep.subr.bf16.mxu0 0
  %1581 = vmatpush1.bf16.msra.mxu0 0
  %1582 = vmatprep.subr.bf16.mxu0 0
  %1583 = vmatpush1.bf16.msra.mxu0 0
  %1584 = vmatprep.subr.bf16.mxu0 0
  %1585 = vmatpush1.bf16.msra.mxu0 0
  %1586 = vmatprep.subr.bf16.mxu0 0
  %1587 = vmatpush1.bf16.msra.mxu0 0
  %1588 = vmatprep.subr.bf16.mxu0 0
  %1589 = vmatpush1.bf16.msra.mxu0 %v1570
  %1590 = vmatprep.subr.bf16.mxu0 0
  %1591 = vmatpush1.bf16.msra.mxu0 %v1569
  %1592 = vmatprep.subr.bf16.mxu0 0
  %1593 = vmatpush2.bf16.msra.mxu0 0
  %1594 = vmatprep.subr.bf16.mxu0 0
  %1595 = vmatpush2.bf16.msra.mxu0 0
  %1596 = vmatprep.subr.bf16.mxu0 0
  %1597 = vmatpush2.bf16.msra.mxu0 0
  %1598 = vmatprep.subr.bf16.mxu0 0
  %1599 = vmatpush2.bf16.msra.mxu0 0
  %1600 = vmatprep.subr.bf16.mxu0 0
  %1601 = vmatpush2.bf16.msra.mxu0 0
  %1602 = vmatprep.subr.bf16.mxu0 0
  %1603 = vmatpush2.bf16.msra.mxu0 0
  %1604 = vmatprep.subr.bf16.mxu0 0
  %1605 = vmatpush2.bf16.msra.mxu0 0
  %1606 = vmatprep.subr.bf16.mxu0 0
  %1607 = vmatpush2.bf16.msra.mxu0 0
  %1608 = vmatprep.mubr.bf16.mxu0 0
  %1609 = vmatmul.mubr.bf16.gmra.mxu0 %v1574
  %v1610 = vpop.f32.mrf.mxu0
  %v1611 = vadd.f32 %v1556, %v1610
  %v1612 = vpop.f32.mrf.mxu0
  %v1613 = vpop.f32.mrf.mxu0
  %v1614 = vpop.f32.mrf.mxu0
  %1615 = vdwg.mxu0
  %v1616 = vmax.f32 %v1611, 0.0
  %v1617 = vpack.c.bf16 %v1616, %v1616
  %v1618 = vld [vmem:[%s9] sm:$0xf]
  %v1619 = vld [vmem:[%s9 + $0x4] sm:$0xf]
  %v1620 = vld [vmem:[%s9 + $0x8] sm:$0xf]
  %v1621 = vld [vmem:[%s9 + $0xc] sm:$0xf]
  %v1622 = vld [vmem:[%s9 + $0x10] sm:$0xf]
  %v1623 = vld [vmem:[%s9 + $0x14] sm:$0xf]
  %v1624 = vld [vmem:[%s9 + $0x18] sm:$0xf]
  %v1625 = vld [vmem:[%s9 + $0x1c] sm:$0xf]
  %v1626 = vld [vmem:[%s10] sm:$0x1]
  %v1628 = vlaneseq
  %v1629 = vshrl.u32 %v1628, 7
  %v1630 = vsub.s32 0, %v1629
  %v1631 = vrot.slane %v1626, %v1630
  %v1641 = vunpack.c.l.b16 %v1618
  %v1642 = vunpack.c.l.b16 %v1619
  %v1643 = vunpack.c.l.b16 %v1620
  %v1644 = vunpack.c.l.b16 %v1621
  %v1645 = vunpack.c.l.b16 %v1622
  %v1646 = vunpack.c.l.b16 %v1623
  %v1647 = vunpack.c.l.b16 %v1624
  %v1648 = vunpack.c.l.b16 %v1625
  %v1649 = vpack.c.b16 %v1642, %v1641
  %v1650 = vpack.c.b16 %v1644, %v1643
  %v1651 = vpack.c.b16 %v1646, %v1645
  %v1652 = vpack.c.b16 %v1648, %v1647
  %vm1657 = vcmask 523264
  %v1659 = vsel %vm1657, %v1617, 0
  %1661 = vmatprep.subr.bf16.mxu0 0
  %1662 = vmatpush1.bf16.msra.mxu0 0
  %1663 = vmatprep.subr.bf16.mxu0 0
  %1664 = vmatpush1.bf16.msra.mxu0 0
  %1665 = vmatprep.subr.bf16.mxu0 0
  %1666 = vmatpush1.bf16.msra.mxu0 0
  %1667 = vmatprep.subr.bf16.mxu0 0
  %1668 = vmatpush1.bf16.msra.mxu0 0
  %1669 = vmatprep.subr.bf16.mxu0 0
  %1670 = vmatpush1.bf16.msra.mxu0 %v1652
  %1671 = vmatprep.subr.bf16.mxu0 0
  %1672 = vmatpush1.bf16.msra.mxu0 %v1651
  %1673 = vmatprep.subr.bf16.mxu0 0
  %1674 = vmatpush1.bf16.msra.mxu0 %v1650
  %1675 = vmatprep.subr.bf16.mxu0 0
  %1676 = vmatpush1.bf16.msra.mxu0 %v1649
  %1677 = vmatprep.subr.bf16.mxu0 0
  %1678 = vmatpush2.bf16.msra.mxu0 0
  %1679 = vmatprep.subr.bf16.mxu0 0
  %1680 = vmatpush2.bf16.msra.mxu0 0
  %1681 = vmatprep.subr.bf16.mxu0 0
  %1682 = vmatpush2.bf16.msra.mxu0 0
  %1683 = vmatprep.subr.bf16.mxu0 0
  %1684 = vmatpush2.bf16.msra.mxu0 0
  %1685 = vmatprep.subr.bf16.mxu0 0
  %1686 = vmatpush2.bf16.msra.mxu0 0
  %1687 = vmatprep.subr.bf16.mxu0 0
  %1688 = vmatpush2.bf16.msra.mxu0 0
  %1689 = vmatprep.subr.bf16.mxu0 0
  %1690 = vmatpush2.bf16.msra.mxu0 0
  %1691 = vmatprep.subr.bf16.mxu0 0
  %1692 = vmatpush2.bf16.msra.mxu0 0
  %1693 = vmatprep.mubr.bf16.mxu0 0
  %1694 = vmatmul.mubr.bf16.gmra.mxu0 %v1659
  %v1695 = vpop.f32.mrf.mxu0
  %v1696 = vadd.f32 %v1631, %v1695
  %v1697 = vpop.f32.mrf.mxu0
  %v1698 = vpop.f32.mrf.mxu0
  %v1699 = vpop.f32.mrf.mxu0
  %1700 = vdwg.mxu0
  %vm1701 = vcmask 31744
  %1702 = vst.msk [vmem:[%s11] sm:$0xff] %vm1701, %v1696
  // Predicated region
  $region46: #{lstm_model_forward.1} parent=0 // pred_check
    _
  $region47: #{lstm_model_forward.1} parent=0 // pred_check_branch
    %1704 = sbr.rel (0) target = $region49
  $region48: #{lstm_model_forward.1} parent=0 // pred_region
    _
  $region49: #{lstm_model_forward.1} parent=0 // pred_fallthru
    _
  // Predicated region
  $region50: #{lstm_model_forward.1} parent=0 // pred_check
    _
  $region51: #{lstm_model_forward.1} parent=0 // pred_check_branch
    %1706 = sbr.rel (0) target = $region53
  $region52: #{lstm_model_forward.1} parent=0 // pred_region
    _
  $region53: #{lstm_model_forward.1} parent=0 // pred_fallthru
    _

</llo_original>
